<compile_context>
chip_gen: v5e
topology: v5e:2x2
jax: 0.10.0
libtpu: 0.0.40
codegen_flags: <defaults>
</compile_context>

<pallas_src>
import functools

import jax
import jax.numpy as jnp
from jax.experimental import pallas as pl
from jax.experimental.pallas import tpu as pltpu

# ----------------------------------------------------------------------------
# Architecture config (segformer_mit_b3)
# ----------------------------------------------------------------------------
EMBED_DIMS = (64, 128, 320, 512)
NUM_HEADS = (1, 2, 5, 8)
DEPTHS = (3, 4, 18, 3)
SR_RATIOS = (8, 4, 2, 1)
HEAD_EMBED = 256

# Residual-stream precision. TODO(synk): bf16 would halve residual HBM traffic
# (18 blocks in stage 3) at a small accuracy cost vs. the f32 PyTorch reference.
RESIDUAL_DTYPE = jnp.float32


def _default_vmem_limit():
    """Generation-aware scoped-VMEM budget (v5e/v6e: 128 MiB phys, v7x: 64 MiB)."""
    try:
        phys = int(pltpu.get_tpu_info().vmem_capacity_bytes)
        return int(min(phys * 3 // 4, 100 * 1024 * 1024))
    except Exception:
        return 32 * 1024 * 1024


_VMEM_LIMIT = _default_vmem_limit()


def _round_up(x, m):
    return (x + m - 1) // m * m


def _pick_lane_tile(dim, target=512, quantum=128):
    """Largest tile <= target that is a multiple of `quantum` and divides dim.
    Falls back to the full dim (always a legal TPU block)."""
    if dim <= target or dim % quantum != 0:
        return dim
    t = (target // quantum) * quantum
    while t > 0 and dim % t != 0:
        t -= quantum
    return t if t > 0 else dim


# ----------------------------------------------------------------------------
# In-kernel math helpers
# ----------------------------------------------------------------------------
def _erf_approx(x):
    # Exact-GELU erf computed with the Abramowitz&Stegun 7.1.26 rational
    # approximation; the long-latency divide goes to the EUP via pl.reciprocal.
    a1, a2, a3, a4, a5 = (0.254829592, -0.284496736, 1.421413741,
                          -1.453152027, 1.061405429)
    p = 0.3275911
    sgn = jnp.where(x < 0.0, -1.0, 1.0)
    ax = jnp.abs(x)
    t = pl.reciprocal(1.0 + p * ax, approx=True)
    poly = ((((a5 * t + a4) * t + a3) * t + a2) * t + a1) * t
    return sgn * (1.0 - poly * jnp.exp(-ax * ax))


def _gelu_exact(x):
    return 0.5 * x * (1.0 + _erf_approx(x * 0.7071067811865476))


# ----------------------------------------------------------------------------
# Fused matmul kernel:  out = [LN_in(x)] @ W + b  -> [act] -> [LN_out] -> [+res]
# ----------------------------------------------------------------------------
def _mm_kernel(*refs, act, has_ln_in, ln_in_eps, has_ln_out, ln_out_eps, has_res):
    it = iter(refs)
    x_ref = next(it)
    w_ref = next(it)
    b_ref = next(it)
    lig_ref = lib_ref = log_ref = lob_ref = r_ref = None
    if has_ln_in:
        lig_ref = next(it)
        lib_ref = next(it)
    if has_ln_out:
        log_ref = next(it)
        lob_ref = next(it)
    if has_res:
        r_ref = next(it)
    o_ref = next(it)

    xv = x_ref[...]
    if has_ln_in:
        xf = xv.astype(jnp.float32)
        mu = jnp.mean(xf, axis=-1, keepdims=True)
        xc = xf - mu
        var = jnp.mean(xc * xc, axis=-1, keepdims=True)
        xf = xc * jax.lax.rsqrt(var + ln_in_eps) * lig_ref[...] + lib_ref[...]
        xv = xf.astype(jnp.bfloat16)
    elif xv.dtype != jnp.bfloat16:
        xv = xv.astype(jnp.bfloat16)          # in-kernel cast, no extra HBM pass

    acc = jnp.dot(xv, w_ref[...], preferred_element_type=jnp.float32)
    acc = acc + b_ref[...]

    if act == "relu":
        acc = jnp.maximum(acc, 0.0)
    elif act == "gelu":
        acc = _gelu_exact(acc)

    if has_ln_out:
        mu = jnp.mean(acc, axis=-1, keepdims=True)
        xc = acc - mu
        var = jnp.mean(xc * xc, axis=-1, keepdims=True)
        acc = xc * jax.lax.rsqrt(var + ln_out_eps) * log_ref[...] + lob_ref[...]

    if has_res:
        acc = acc + r_ref[...]

    o_ref[...] = acc.astype(o_ref.dtype)


@functools.partial(
    jax.jit,
    static_argnames=("act", "ln_in_eps", "ln_out_eps", "out_dtype", "tm", "tn"))
def fused_matmul(x, w, b, ln_in_g=None, ln_in_b=None, ln_out_g=None,
                 ln_out_b=None, residual=None, act="none",
                 ln_in_eps=1e-6, ln_out_eps=1e-6,
                 out_dtype=jnp.float32, tm=512, tn=512):
    """x: (M, K), w: (K, N) [stored bf16], b: (N,) -> (M, N).

    Optional fusions: LayerNorm over K applied to x before the dot (ln_in_*),
    LayerNorm over N applied after bias (ln_out_*), relu/gelu epilogue,
    residual (M, N) added at the end. MXU inputs are bf16, accumulation f32.
    """
    M, K = x.shape
    N = w.shape[1]
    has_ln_in = ln_in_g is not None
    has_ln_out = ln_out_g is not None
    has_res = residual is not None

    w = w.astype(jnp.bfloat16)

    tm_eff = min(tm, _round_up(M, 8))
    Mp = _round_up(M, tm_eff)
    # Full-N tile whenever a LayerNorm is fused: the LN-in prologue is computed
    # exactly once per M tile (no recompute across N tiles); LN-out needs full N
    # anyway. N <= 2048 for this model so the bf16 weight tile stays small.
    if has_ln_in or has_ln_out:
        tn_eff = N
    else:
        tn_eff = _pick_lane_tile(N, target=tn, quantum=128)

    if Mp != M:
        x = jnp.pad(x, ((0, Mp - M), (0, 0)))
        if has_res:
            residual = jnp.pad(residual, ((0, Mp - M), (0, 0)))

    grid = (Mp // tm_eff, N // tn_eff)

    in_specs = [
        pl.BlockSpec((tm_eff, K), lambda i, j: (i, 0)),
        pl.BlockSpec((K, tn_eff), lambda i, j: (0, j)),
        pl.BlockSpec((1, tn_eff), lambda i, j: (0, j)),
    ]
    inputs = [x, w, b.reshape(1, N).astype(jnp.float32)]
    if has_ln_in:
        in_specs += [pl.BlockSpec((1, K), lambda i, j: (0, 0))] * 2
        inputs += [ln_in_g.reshape(1, K).astype(jnp.float32),
                   ln_in_b.reshape(1, K).astype(jnp.float32)]
    if has_ln_out:
        in_specs += [pl.BlockSpec((1, tn_eff), lambda i, j: (0, j))] * 2
        inputs += [ln_out_g.reshape(1, N).astype(jnp.float32),
                   ln_out_b.reshape(1, N).astype(jnp.float32)]
    if has_res:
        in_specs.append(pl.BlockSpec((tm_eff, tn_eff), lambda i, j: (i, j)))
        inputs.append(residual)

    kernel = functools.partial(
        _mm_kernel, act=act,
        has_ln_in=has_ln_in, ln_in_eps=ln_in_eps,
        has_ln_out=has_ln_out, ln_out_eps=ln_out_eps,
        has_res=has_res)

    out = pl.pallas_call(
        kernel,
        out_shape=jax.ShapeDtypeStruct((Mp, N), out_dtype),
        grid=grid,
        in_specs=in_specs,
        out_specs=pl.BlockSpec((tm_eff, tn_eff), lambda i, j: (i, j)),
        compiler_params=pltpu.CompilerParams(
            dimension_semantics=("parallel", "parallel"),
            vmem_limit_bytes=_VMEM_LIMIT),
    )(*inputs)
    return out[:M] if Mp != M else out


# ----------------------------------------------------------------------------
# Standalone (tiled) LayerNorm
# ----------------------------------------------------------------------------
def _ln_kernel(x_ref, g_ref, b_ref, o_ref, *, eps):
    x = x_ref[...].astype(jnp.float32)
    mu = jnp.mean(x, axis=-1, keepdims=True)
    xc = x - mu
    var = jnp.mean(xc * xc, axis=-1, keepdims=True)
    y = xc * jax.lax.rsqrt(var + eps) * g_ref[...] + b_ref[...]
    o_ref[...] = y.astype(o_ref.dtype)


@functools.partial(jax.jit, static_argnames=("eps", "out_dtype", "tm"))
def layernorm(x, g, b, eps, out_dtype=jnp.float32, tm=512):
    """x: (M, C); normalize over the last dim."""
    M, C = x.shape
    tm_eff = min(tm, _round_up(M, 8))
    Mp = _round_up(M, tm_eff)
    xp = jnp.pad(x, ((0, Mp - M), (0, 0))) if Mp != M else x
    out = pl.pallas_call(
        functools.partial(_ln_kernel, eps=eps),
        out_shape=jax.ShapeDtypeStruct((Mp, C), out_dtype),
        grid=(Mp // tm_eff,),
        in_specs=[pl.BlockSpec((tm_eff, C), lambda i: (i, 0)),
                  pl.BlockSpec((1, C), lambda i: (0, 0)),
                  pl.BlockSpec((1, C), lambda i: (0, 0))],
        out_specs=pl.BlockSpec((tm_eff, C), lambda i: (i, 0)),
        compiler_params=pltpu.CompilerParams(
            dimension_semantics=("parallel",),
            vmem_limit_bytes=_VMEM_LIMIT),
    )(xp, g.reshape(1, C), b.reshape(1, C))
    return out[:M] if Mp != M else out


# ----------------------------------------------------------------------------
# Multi-head attention (heads packed in the lane dim; lane-dense output block)
# ----------------------------------------------------------------------------
def _attn_kernel(q_ref, k_ref, v_ref, o_ref, *, scale, num_heads):
    C = q_ref.shape[-1]
    E = C // num_heads
    k_all = k_ref[0]
    v_all = v_ref[0]
    for h in range(num_heads):
        lo, hi = h * E, (h + 1) * E
        # scale folded into q (E = 64 for all stages -> scale = 2^-3, exact in bf16)
        qh = q_ref[0, :, lo:hi] * scale
        s = jax.lax.dot_general(qh, k_all[:, lo:hi], (((1,), (1,)), ((), ())),
                                preferred_element_type=jnp.float32)
        s = s - jnp.max(s, axis=-1, keepdims=True)
        p = jnp.exp(s)
        l = jnp.sum(p, axis=-1, keepdims=True)
        pv = jnp.dot(p.astype(jnp.bfloat16), v_all[:, lo:hi],
                     preferred_element_type=jnp.float32)
        # fold 1/l into the (tq, E) output instead of the (tq, M) prob matrix
        pv = pv * pl.reciprocal(l, approx=True)
        o_ref[0, :, lo:hi] = pv.astype(o_ref.dtype)


@functools.partial(jax.jit, static_argnames=("num_heads", "scale", "tq"))
def attention(q, k, v, num_heads, scale, tq=256):
    """q: (B, N, C), k/v: (B, M, C) with heads packed along C -> (B, N, C)."""
    q = q.astype(jnp.bfloat16)
    k = k.astype(jnp.bfloat16)
    v = v.astype(jnp.bfloat16)
    B, N, C = q.shape
    M = k.shape[1]
    tq_eff = min(tq, _round_up(N, 8))
    Np = _round_up(N, tq_eff)
    qp = jnp.pad(q, ((0, 0), (0, Np - N), (0, 0))) if Np != N else q

    out = pl.pallas_call(
        functools.partial(_attn_kernel, scale=scale, num_heads=num_heads),
        out_shape=jax.ShapeDtypeStruct((B, Np, C), jnp.bfloat16),
        grid=(B, Np // tq_eff),
        in_specs=[pl.BlockSpec((1, tq_eff, C), lambda b, i: (b, i, 0)),
                  pl.BlockSpec((1, M, C), lambda b, i: (b, 0, 0)),
                  pl.BlockSpec((1, M, C), lambda b, i: (b, 0, 0))],
        out_specs=pl.BlockSpec((1, tq_eff, C), lambda b, i: (b, i, 0)),
        compiler_params=pltpu.CompilerParams(
            dimension_semantics=("parallel", "parallel"),
            vmem_limit_bytes=_VMEM_LIMIT),
    )(qp, k, v)
    return out[:, :N] if Np != N else out


# ----------------------------------------------------------------------------
# Depthwise 3x3 conv + bias + exact GELU epilogue
#   grid = (batch, channel tiles); in-kernel row-strip loop keeps the f32 live
#   set to a strip, and only 3 W-shifted bf16->f32 slices are made per strip
#   (the 9 taps reuse them via free outer-axis (H) slices).
# ----------------------------------------------------------------------------
def _dwconv_kernel(x_ref, w_ref, b_ref, o_ref, *, row_tile):
    _, H, W, _ = o_ref.shape
    wts = w_ref[...]          # (9, tc) f32
    bias = b_ref[...]         # (1, tc) f32
    for r0 in range(0, H, row_tile):
        rr = min(row_tile, H - r0)
        slab = x_ref[0, r0:r0 + rr + 2]                      # (rr+2, W+2, tc) bf16
        # TODO(synk): use pltpu.roll along the W (sublane) axis for the dx
        # shifts to keep them on the XLU instead of relayout copies.
        xdx = [slab[:, dx:dx + W, :].astype(jnp.float32) for dx in range(3)]
        acc = None
        for dy in range(3):
            for dx in range(3):
                tap = xdx[dx][dy:dy + rr]                    # outer-axis slice: free
                t = dy * 3 + dx
                term = tap * wts[t:t + 1, :]
                acc = term if acc is None else acc + term
        acc = acc + bias
        acc = _gelu_exact(acc)
        o_ref[0, r0:r0 + rr] = acc.astype(o_ref.dtype)


def _dw_pick_ctile(hp2, wp2, c, budget=12 * 1024 * 1024):
    """Largest multiple-of-128 channel tile dividing c with bf16 in+out block
    under `budget` bytes (keeps double-buffered VMEM modest at native res)."""
    if c % 128 != 0:
        return c
    per_ch = (hp2 * wp2 + (hp2 - 2) * (wp2 - 2)) * 2
    best = 128
    t = 128
    while t <= c:
        if c % t == 0 and per_ch * t <= budget:
            best = t
        t += 128
    return best


@functools.partial(jax.jit, static_argnames=("out_dtype",))
def dwconv3x3_gelu(x_padded, w, b, out_dtype=jnp.bfloat16):
    """Depthwise 3x3 conv. x_padded: (B, H+2, W+2, C) -> GELU(conv) (B, H, W, C)."""
    B, Hp2, Wp2, C = x_padded.shape
    H, W = Hp2 - 2, Wp2 - 2
    tc = _dw_pick_ctile(Hp2, Wp2, C)
    row_tile = max(1, min(H, 8))
    return pl.pallas_call(
        functools.partial(_dwconv_kernel, row_tile=row_tile),
        out_shape=jax.ShapeDtypeStruct((B, H, W, C), out_dtype),
        grid=(B, C // tc),
        in_specs=[pl.BlockSpec((1, Hp2, Wp2, tc), lambda bi, ci: (bi, 0, 0, ci)),
                  pl.BlockSpec((9, tc), lambda bi, ci: (0, ci)),
                  pl.BlockSpec((1, tc), lambda bi, ci: (0, ci))],
        out_specs=pl.BlockSpec((1, H, W, tc), lambda bi, ci: (bi, 0, 0, ci)),
        compiler_params=pltpu.CompilerParams(
            dimension_semantics=("parallel", "parallel"),
            vmem_limit_bytes=_VMEM_LIMIT),
    )(x_padded.astype(jnp.bfloat16), w, b.reshape(1, C))


# ----------------------------------------------------------------------------
# JAX glue (index math only)
# ----------------------------------------------------------------------------
def im2col(x, kh, kw, stride, pad):
    """x: (B, H, W, C) -> ((B, Ho*Wo, kh*kw*C), Ho, Wo). Tap-major, channel-minor."""
    B, H, W, C = x.shape
    xp = jnp.pad(x, ((0, 0), (pad, pad), (pad, pad), (0, 0)))
    Ho = (H + 2 * pad - kh) // stride + 1
    Wo = (W + 2 * pad - kw) // stride + 1
    cols = []
    for i in range(kh):
        for j in range(kw):
            cols.append(
                xp[:, i:i + stride * (Ho - 1) + 1:stride,
                      j:j + stride * (Wo - 1) + 1:stride, :])
    patches = jnp.stack(cols, axis=3)                 # (B, Ho, Wo, kh*kw, C)
    return patches.reshape(B, Ho * Wo, kh * kw * C), Ho, Wo


def bilinear_resize_nhwc(x, out_h, out_w):
    """PyTorch F.interpolate(mode='bilinear', align_corners=False) semantics."""
    B, H, W, C = x.shape
    if H == out_h and W == out_w:
        return x

    def src_idx(out_size, in_size):
        scale = in_size / out_size
        d = jnp.arange(out_size, dtype=jnp.float32)
        s = jnp.maximum((d + 0.5) * scale - 0.5, 0.0)
        i0 = jnp.floor(s)
        lam = s - i0
        i0 = jnp.minimum(i0.astype(jnp.int32), in_size - 1)
        i1 = jnp.minimum(i0 + 1, in_size - 1)
        return i0, i1, lam

    y0, y1, ly = src_idx(out_h, H)
    x0, x1, lx = src_idx(out_w, W)
    lx = lx[None, None, :, None]
    ly = ly[None, :, None, None]

    rows0 = x[:, y0]
    rows1 = x[:, y1]
    top = rows0[:, :, x0] * (1.0 - lx) + rows0[:, :, x1] * lx
    bot = rows1[:, :, x0] * (1.0 - lx) + rows1[:, :, x1] * lx
    out = top * (1.0 - ly) + bot * ly
    return out.astype(x.dtype)


# ----------------------------------------------------------------------------
# Parameter init (deterministic, synthetic; matmul weights stored in bf16)
# ----------------------------------------------------------------------------
class KeyGen:
    def __init__(self, key):
        self._key = key

    def __call__(self):
        self._key, k = jax.random.split(self._key)
        return k


def _bf16(x):
    return x.astype(jnp.bfloat16)


def init_block(kg, dim, sr):
    hid = dim * 4
    blk = {
        "n1_g": jnp.ones((dim,), jnp.float32), "n1_b": jnp.zeros((dim,), jnp.float32),
        "n2_g": jnp.ones((dim,), jnp.float32), "n2_b": jnp.zeros((dim,), jnp.float32),
        "proj_w": _bf16(0.02 * jax.random.normal(kg(), (dim, dim), jnp.float32)),
        "proj_b": jnp.zeros((dim,), jnp.float32),
        "fc1_w": _bf16(0.02 * jax.random.normal(kg(), (dim, hid), jnp.float32)),
        "fc1_b": jnp.zeros((hid,), jnp.float32),
        "fc2_w": _bf16(0.02 * jax.random.normal(kg(), (hid, dim), jnp.float32)),
        "fc2_b": jnp.zeros((dim,), jnp.float32),
        "dw_w": (2.0 / 9.0) ** 0.5 * jax.random.normal(kg(), (9, hid), jnp.float32),
        "dw_b": jnp.zeros((hid,), jnp.float32),
    }
    if sr > 1:
        blk["q_w"] = _bf16(0.02 * jax.random.normal(kg(), (dim, dim), jnp.float32))
        blk["q_b"] = jnp.zeros((dim,), jnp.float32)
        blk["kv_w"] = _bf16(0.02 * jax.random.normal(kg(), (dim, 2 * dim), jnp.float32))
        blk["kv_b"] = jnp.zeros((2 * dim,), jnp.float32)
        blk["sr_w"] = _bf16((2.0 / (dim * sr * sr)) ** 0.5 *
                            jax.random.normal(kg(), (sr * sr * dim, dim), jnp.float32))
        blk["sr_b"] = jnp.zeros((dim,), jnp.float32)
        blk["srln_g"] = jnp.ones((dim,), jnp.float32)
        blk["srln_b"] = jnp.zeros((dim,), jnp.float32)
    else:
        # q and kv linears merged into one qkv projection (same LN input).
        blk["qkv_w"] = _bf16(0.02 * jax.random.normal(kg(), (dim, 3 * dim), jnp.float32))
        blk["qkv_b"] = jnp.zeros((3 * dim,), jnp.float32)
    return blk


def init_params(key, in_channels, num_classes):
    kg = KeyGen(key)
    stages = []
    for i in range(4):
        dim = EMBED_DIMS[i]
        patch = 7 if i == 0 else 3
        stride = 4 if i == 0 else 2
        cin = in_channels if i == 0 else EMBED_DIMS[i - 1]
        kk = patch * patch * cin
        stages.append({
            "patch": patch, "stride": stride,
            "pe_w": _bf16((2.0 / (dim * patch * patch)) ** 0.5 *
                          jax.random.normal(kg(), (kk, dim), jnp.float32)),
            "pe_b": jnp.zeros((dim,), jnp.float32),
            "pe_ln_g": jnp.ones((dim,), jnp.float32),
            "pe_ln_b": jnp.zeros((dim,), jnp.float32),
            "norm_g": jnp.ones((dim,), jnp.float32),
            "norm_b": jnp.zeros((dim,), jnp.float32),
            "blocks": [init_block(kg, dim, SR_RATIOS[i]) for _ in range(DEPTHS[i])],
        })
    head = {
        "layer_w": [_bf16((2.0 / HEAD_EMBED) ** 0.5 *
                          jax.random.normal(kg(), (c, HEAD_EMBED), jnp.float32))
                    for c in EMBED_DIMS],
        "layer_b": [jnp.zeros((HEAD_EMBED,), jnp.float32) for _ in EMBED_DIMS],
        "fuse_w": (2.0 / HEAD_EMBED) ** 0.5 *
                  jax.random.normal(kg(), (HEAD_EMBED * 4, HEAD_EMBED), jnp.float32),
        "bn_g": jnp.ones((HEAD_EMBED,), jnp.float32),
        "bn_b": jnp.zeros((HEAD_EMBED,), jnp.float32),
        "bn_rm": jnp.zeros((HEAD_EMBED,), jnp.float32),
        "bn_rv": jnp.ones((HEAD_EMBED,), jnp.float32),
        "pred_w": _bf16((2.0 / max(num_classes, 1)) ** 0.5 *
                        jax.random.normal(kg(), (HEAD_EMBED, num_classes), jnp.float32)),
        "pred_b": jnp.zeros((num_classes,), jnp.float32),
    }
    return {"stages": stages, "head": head}


# ----------------------------------------------------------------------------
# Model forward (composing the Pallas kernels)
# ----------------------------------------------------------------------------
def block_apply(blk, x, h, w, num_heads, sr_ratio):
    B, N, C = x.shape
    x2d = x.reshape(B * N, C)                                    # residual stream

    # --- attention branch: norm1 fused into the (q)kv projection where possible
    if sr_ratio == 1:
        qkv = fused_matmul(x2d, blk["qkv_w"], blk["qkv_b"],
                           ln_in_g=blk["n1_g"], ln_in_b=blk["n1_b"],
                           ln_in_eps=1e-6, out_dtype=jnp.bfloat16)
        qkv = qkv.reshape(B, N, 3 * C)
        q, k, v = qkv[:, :, :C], qkv[:, :, C:2 * C], qkv[:, :, 2 * C:]
    else:
        xn = layernorm(x2d, blk["n1_g"], blk["n1_b"], eps=1e-6,
                       out_dtype=jnp.bfloat16)
        q = fused_matmul(xn, blk["q_w"], blk["q_b"],
                         out_dtype=jnp.bfloat16).reshape(B, N, C)
        hs, ws = h // sr_ratio, w // sr_ratio
        xs = xn.reshape(B, h, w, C)
        xs = xs.reshape(B, hs, sr_ratio, ws, sr_ratio, C)
        xs = xs.transpose(0, 1, 3, 2, 4, 5).reshape(
            B * hs * ws, sr_ratio * sr_ratio * C)
        xr = fused_matmul(xs, blk["sr_w"], blk["sr_b"],
                          out_dtype=jnp.bfloat16)                # spatial reduction
        kv = fused_matmul(xr, blk["kv_w"], blk["kv_b"],
                          ln_in_g=blk["srln_g"], ln_in_b=blk["srln_b"],
                          ln_in_eps=1e-5, out_dtype=jnp.bfloat16)
        kv = kv.reshape(B, hs * ws, 2 * C)
        k, v = kv[:, :, :C], kv[:, :, C:]

    E = C // num_heads
    a = attention(q, k, v, num_heads=num_heads, scale=float(E) ** -0.5)

    # out-projection with the residual add fused in (drop_path = identity)
    x_attn = fused_matmul(a.reshape(B * N, C), blk["proj_w"], blk["proj_b"],
                          residual=x2d, out_dtype=RESIDUAL_DTYPE)

    # --- FFN branch: norm2 fused into fc1, GELU fused into the depthwise conv,
    #     residual fused into fc2
    hid = blk["fc1_w"].shape[1]
    y = fused_matmul(x_attn, blk["fc1_w"], blk["fc1_b"],
                     ln_in_g=blk["n2_g"], ln_in_b=blk["n2_b"], ln_in_eps=1e-6,
                     out_dtype=jnp.bfloat16)
    y = y.reshape(B, h, w, hid)
    y = jnp.pad(y, ((0, 0), (1, 1), (1, 1), (0, 0)))
    y = dwconv3x3_gelu(y, blk["dw_w"], blk["dw_b"])              # (B, h, w, hid) bf16
    out = fused_matmul(y.reshape(B * N, hid), blk["fc2_w"], blk["fc2_b"],
                       residual=x_attn, out_dtype=RESIDUAL_DTYPE)
    return out.reshape(B, N, C)


def stage_apply(sp, x_nhwc, num_heads, sr_ratio):
    patch, stride = sp["patch"], sp["stride"]
    # TODO(synk): replace the im2col HBM materialization with a tap-accumulating
    # matmul (shifted/strided reads per tap accumulating into a VMEM scratch).
    cols, h, w = im2col(x_nhwc, patch, patch, stride, patch // 2)
    B, N, K = cols.shape
    # overlap patch embed: conv (as matmul) + bias with the LayerNorm epilogue fused
    x = fused_matmul(cols.reshape(B * N, K), sp["pe_w"], sp["pe_b"],
                     ln_out_g=sp["pe_ln_g"], ln_out_b=sp["pe_ln_b"],
                     ln_out_eps=1e-5, out_dtype=RESIDUAL_DTYPE)
    C = x.shape[1]
    x = x.reshape(B, N, C)
    for blk in sp["blocks"]:
        x = block_apply(blk, x, h, w, num_heads, sr_ratio)
    # stage feature emitted in bf16: the consumers (next-stage patch embed and the
    # decode-head unify matmul) feed MXU matmuls, so this halves their input DMA.
    xn = layernorm(x.reshape(B * N, C), sp["norm_g"], sp["norm_b"], eps=1e-6,
                   out_dtype=jnp.bfloat16)
    return xn.reshape(B, h, w, C)                                # NHWC stage feature


def head_apply(p, feats):
    B, H0, W0, _ = feats[0].shape
    unify = []
    for f, lw, lb in zip(feats, p["layer_w"], p["layer_b"]):
        Bc, Hc, Wc, Cc = f.shape
        u = fused_matmul(f.reshape(Bc * Hc * Wc, Cc), lw, lb,
                         out_dtype=jnp.bfloat16)
        unify.append(u.reshape(Bc, Hc, Wc, HEAD_EMBED))
    ups = [unify[0]] + [bilinear_resize_nhwc(u, H0, W0) for u in unify[1:]]
    concat = jnp.concatenate(ups[::-1], axis=-1)                 # (B, H0, W0, 4E) bf16

    # linear_fuse (1x1, no bias) + eval BatchNorm folded + ReLU fused in one matmul
    bn_scale = p["bn_g"] / jnp.sqrt(p["bn_rv"] + 1e-5)
    w_fused = (p["fuse_w"] * bn_scale[None, :]).astype(jnp.bfloat16)
    b_fused = p["bn_b"] - p["bn_rm"] * bn_scale
    z = fused_matmul(concat.reshape(B * H0 * W0, HEAD_EMBED * 4),
                     w_fused, b_fused, act="relu", out_dtype=jnp.bfloat16)

    # linear_pred (1x1): pad num_classes up to a lane-dense 128 so the output
    # store is unmasked, then slice the real classes back out.
    ncls = p["pred_w"].shape[1]
    npad = _round_up(max(ncls, 128), 128)
    pred_w = jnp.pad(p["pred_w"], ((0, 0), (0, npad - ncls)))
    pred_b = jnp.pad(p["pred_b"], ((0, npad - ncls),))
    z = fused_matmul(z, pred_w, pred_b)
    z = z[:, :ncls]
    return z.reshape(B, H0, W0, ncls)


def segformer_forward(params, x_nchw):
    B, Cin, H, W = x_nchw.shape
    x = jnp.transpose(x_nchw, (0, 2, 3, 1)).astype(jnp.bfloat16)  # NCHW -> NHWC, bf16
    feats = []
    for i, sp in enumerate(params["stages"]):
        x = stage_apply(sp, x, NUM_HEADS[i], SR_RATIOS[i])
        feats.append(x)
    logits = head_apply(params["head"], feats)                   # (B, H/4, W/4, nc) f32
    logits = bilinear_resize_nhwc(logits, H, W)
    return jnp.transpose(logits, (0, 3, 1, 2))                   # NHWC -> NCHW


# ----------------------------------------------------------------------------
# Main
# ----------------------------------------------------------------------------
if __name__ == "__main__":
    key = jax.random.PRNGKey(0)
    kparams, kx = jax.random.split(key)

    in_channels = 3
    num_classes = 4
    params = init_params(kparams, in_channels, num_classes)

    x = jax.random.normal(kx, (2, in_channels, 64, 64), jnp.float32)

    out = segformer_forward(params, x)
    out = jax.block_until_ready(out)

    assert out.shape == (2, num_classes, 64, 64), out.shape
    assert bool(jnp.all(jnp.isfinite(out)))
    print("KERNEL_OK")
</pallas_src>

<mosaic_0001>
module attributes {stable_mosaic.version = 11 : i64} {
  func.func @_mm_kernel(%arg0: i32, %arg1: i32, %arg2: memref<512x147xbf16, #tpu.memory_space<vmem>>, %arg3: memref<147x64xbf16, #tpu.memory_space<vmem>>, %arg4: memref<1x64xf32, #tpu.memory_space<vmem>>, %arg5: memref<1x64xf32, #tpu.memory_space<vmem>>, %arg6: memref<1x64xf32, #tpu.memory_space<vmem>>, %arg7: memref<512x64xf32, #tpu.memory_space<vmem>>) attributes {dimension_semantics = [#tpu.dimension_semantics<parallel>, #tpu.dimension_semantics<parallel>], iteration_bounds = array<i64: 1, 1>, scalar_prefetch = 0 : i64, scratch_operands = 0 : i64, tpu.core_type = #tpu.core_type<tc>, window_params = [{transform_indices = @transform_0, window_bounds = array<i64: 512, 147>}, {transform_indices = @transform_1, window_bounds = array<i64: 147, 64>}, {transform_indices = @transform_2, window_bounds = array<i64: 1, 64>}, {transform_indices = @transform_3, window_bounds = array<i64: 1, 64>}, {transform_indices = @transform_4, window_bounds = array<i64: 1, 64>}, {transform_indices = @transform_5, window_bounds = array<i64: 512, 64>}]} {
    %c0 = arith.constant 0 : index
    %c0_0 = arith.constant 0 : index
    %0 = vector.load %arg2[%c0, %c0_0] : memref<512x147xbf16, #tpu.memory_space<vmem>>, vector<512x147xbf16>
    %c0_1 = arith.constant 0 : index
    %c0_2 = arith.constant 0 : index
    %1 = vector.load %arg3[%c0_1, %c0_2] : memref<147x64xbf16, #tpu.memory_space<vmem>>, vector<147x64xbf16>
    %cst = arith.constant dense<0.000000e+00> : vector<512x64xf32>
    %2 = tpu.matmul %0, %1, %cst {dimension_numbers = #tpu.dot_dimension_numbers<[1], [0], [0], [1], [0, 0, 1, 1], [], []>} : vector<512x147xbf16>, vector<147x64xbf16>, vector<512x64xf32> -> vector<512x64xf32>
    %c0_3 = arith.constant 0 : index
    %c0_4 = arith.constant 0 : index
    %3 = vector.load %arg4[%c0_3, %c0_4] : memref<1x64xf32, #tpu.memory_space<vmem>>, vector<1x64xf32>
    %4 = vector.broadcast %3 : vector<1x64xf32> to vector<512x64xf32>
    %5 = arith.addf %2, %4 : vector<512x64xf32>
    %cst_5 = arith.constant dense<0.000000e+00> : vector<512xf32>
    %6 = vector.multi_reduction <add>, %5, %cst_5 [1] : vector<512x64xf32> to vector<512xf32>
    %7 = vector.shape_cast %6 : vector<512xf32> to vector<512x1xf32>
    %cst_6 = arith.constant 6.400000e+01 : f32
    %8 = vector.broadcast %cst_6 : f32 to vector<512x1xf32>
    %9 = arith.divf %7, %8 : vector<512x1xf32>
    %10 = vector.broadcast %9 : vector<512x1xf32> to vector<512x64xf32>
    %11 = arith.subf %5, %10 : vector<512x64xf32>
    %12 = arith.mulf %11, %11 : vector<512x64xf32>
    %cst_7 = arith.constant dense<0.000000e+00> : vector<512xf32>
    %13 = vector.multi_reduction <add>, %12, %cst_7 [1] : vector<512x64xf32> to vector<512xf32>
    %14 = vector.shape_cast %13 : vector<512xf32> to vector<512x1xf32>
    %cst_8 = arith.constant 6.400000e+01 : f32
    %15 = vector.broadcast %cst_8 : f32 to vector<512x1xf32>
    %16 = arith.divf %14, %15 : vector<512x1xf32>
    %cst_9 = arith.constant 9.99999974E-6 : f32
    %17 = vector.broadcast %cst_9 : f32 to vector<512x1xf32>
    %18 = arith.addf %16, %17 : vector<512x1xf32>
    %19 = math.rsqrt %18 : vector<512x1xf32>
    %20 = vector.broadcast %19 : vector<512x1xf32> to vector<512x64xf32>
    %21 = arith.mulf %11, %20 : vector<512x64xf32>
    %c0_10 = arith.constant 0 : index
    %c0_11 = arith.constant 0 : index
    %22 = vector.load %arg5[%c0_10, %c0_11] : memref<1x64xf32, #tpu.memory_space<vmem>>, vector<1x64xf32>
    %23 = vector.broadcast %22 : vector<1x64xf32> to vector<512x64xf32>
    %24 = arith.mulf %21, %23 : vector<512x64xf32>
    %c0_12 = arith.constant 0 : index
    %c0_13 = arith.constant 0 : index
    %25 = vector.load %arg6[%c0_12, %c0_13] : memref<1x64xf32, #tpu.memory_space<vmem>>, vector<1x64xf32>
    %26 = vector.broadcast %25 : vector<1x64xf32> to vector<512x64xf32>
    %27 = arith.addf %24, %26 : vector<512x64xf32>
    %c0_14 = arith.constant 0 : index
    %c0_15 = arith.constant 0 : index
    %28 = vector.load %arg7[%c0_14, %c0_15] : memref<512x64xf32, #tpu.memory_space<vmem>>, vector<512x64xf32>
    tpu.vector_store %arg7[%c0_14, %c0_15], %27 {strides = array<i32>} : memref<512x64xf32, #tpu.memory_space<vmem>>, vector<512x64xf32>,
    return
  }
  func.func @transform_0(%arg0: i32, %arg1: i32) -> (i32, i32) {
    %c0_i32 = arith.constant 0 : i32
    %c0_i32_0 = arith.constant 0 : i32
    return %arg0, %c0_i32 : i32, i32
  }
  func.func @transform_1(%arg0: i32, %arg1: i32) -> (i32, i32) {
    %c0_i32 = arith.constant 0 : i32
    %c0_i32_0 = arith.constant 0 : i32
    return %c0_i32, %arg1 : i32, i32
  }
  func.func @transform_2(%arg0: i32, %arg1: i32) -> (i32, i32) {
    %c0_i32 = arith.constant 0 : i32
    %c0_i32_0 = arith.constant 0 : i32
    return %c0_i32, %arg1 : i32, i32
  }
  func.func @transform_3(%arg0: i32, %arg1: i32) -> (i32, i32) {
    %c0_i32 = arith.constant 0 : i32
    %c0_i32_0 = arith.constant 0 : i32
    return %c0_i32, %arg1 : i32, i32
  }
  func.func @transform_4(%arg0: i32, %arg1: i32) -> (i32, i32) {
    %c0_i32 = arith.constant 0 : i32
    %c0_i32_0 = arith.constant 0 : i32
    return %c0_i32, %arg1 : i32, i32
  }
  func.func @transform_5(%arg0: i32, %arg1: i32) -> (i32, i32) {
    %c0_i32 = arith.constant 0 : i32
    return %arg0, %arg1 : i32, i32
  }
}

</mosaic_0001>

<llo_original>
// kernel: fused_matmul.1
$region0: #{fused_matmul.1}
  #allocation0 [shape = 'u32[]', space=smem, size = 0x4, offset = 0x4, fixed_abs, tag = 'smem constant byte address 0x4 - core index']
  #allocation1 [shape = 'u32[72,128]{1,0:T(1,128)}', space=vmem, size = 0x9000, scoped, tag = 'internal scratch']
  %s0 = inlined_call_operand.vmem [shape: bf16[512,147], index: 0, kind: input, shape index: {}]
  %s1 = inlined_call_operand.vmem [shape: bf16[147,64], index: 1, kind: input, shape index: {}]
  %s2 = inlined_call_operand.vmem [shape: f32[1,64], index: 2, kind: input, shape index: {}]
  %s3 = inlined_call_operand.vmem [shape: f32[1,64], index: 3, kind: input, shape index: {}]
  %s4 = inlined_call_operand.vmem [shape: f32[1,64], index: 4, kind: input, shape index: {}]
  %s5 = inlined_call_operand.vmem [shape: f32[512,64], index: 5, kind: output, shape index: {}]
  %s6 = sld [smem:[#allocation0]]
  $region30: #{fused_matmul.1} parent=0
    _
  %s8 = ssub.s32 1, %s6
  %s9 = scalar_select 0, %s8, %s6
  // Predicated region
  $region2: #{fused_matmul.1} parent=0 // pred_check
    _
  $region3: #{fused_matmul.1} parent=0 // pred_check_branch
    %11 = sbr.rel (0) target = $region5
  $region4: #{fused_matmul.1} parent=0 // pred_region
    _
  $region5: #{fused_matmul.1} parent=0 // pred_fallthru
    _
  // Predicated region
  $region6: #{fused_matmul.1} parent=0 // pred_check
    _
  $region7: #{fused_matmul.1} parent=0 // pred_check_branch
    %13 = sbr.rel (0) target = $region9
  $region8: #{fused_matmul.1} parent=0 // pred_region
    _
  $region9: #{fused_matmul.1} parent=0 // pred_fallthru
    _
  // Predicated region
  $region10: #{fused_matmul.1} parent=0 // pred_check
    _
  $region11: #{fused_matmul.1} parent=0 // pred_check_branch
    %15 = sbr.rel (0) target = $region13
  $region12: #{fused_matmul.1} parent=0 // pred_region
    _
  $region13: #{fused_matmul.1} parent=0 // pred_fallthru
    _
  // Predicated region
  $region14: #{fused_matmul.1} parent=0 // pred_check
    _
  $region15: #{fused_matmul.1} parent=0 // pred_check_branch
    %17 = sbr.rel (0) target = $region17
  $region16: #{fused_matmul.1} parent=0 // pred_region
    _
  $region17: #{fused_matmul.1} parent=0 // pred_fallthru
    _
  // Predicated region
  $region18: #{fused_matmul.1} parent=0 // pred_check
    _
  $region19: #{fused_matmul.1} parent=0 // pred_check_branch
    %19 = sbr.rel (0) target = $region21
  $region20: #{fused_matmul.1} parent=0 // pred_region
    _
  $region21: #{fused_matmul.1} parent=0 // pred_fallthru
    _
  %v21 = vld [vmem:[%s0] sm:$0xff]
  %v22 = vld [vmem:[%s0 + $0x8] sm:$0xff]
  %v23 = vld [vmem:[%s0 + $0x10] sm:$0xff]
  %v24 = vld [vmem:[%s0 + $0x18] sm:$0xff]
  %v25 = vld [vmem:[%s0 + $0x20] sm:$0xff]
  %v26 = vld [vmem:[%s0 + $0x28] sm:$0xff]
  %v27 = vld [vmem:[%s0 + $0x30] sm:$0xff]
  %v28 = vld [vmem:[%s0 + $0x38] sm:$0xff]
  %v29 = vld [vmem:[%s0 + $0x40] sm:$0xff]
  %v30 = vld [vmem:[%s0 + $0x48] sm:$0xff]
  %v31 = vld [vmem:[%s0 + $0x50] sm:$0xff]
  %v32 = vld [vmem:[%s0 + $0x58] sm:$0xff]
  %v33 = vld [vmem:[%s0 + $0x60] sm:$0xff]
  %v34 = vld [vmem:[%s0 + $0x68] sm:$0xff]
  %v35 = vld [vmem:[%s0 + $0x70] sm:$0xff]
  %v36 = vld [vmem:[%s0 + $0x78] sm:$0xff]
  %v37 = vld [vmem:[%s0 + $0x80] sm:$0xff]
  %v38 = vld [vmem:[%s0 + $0x88] sm:$0xff]
  %v39 = vld [vmem:[%s0 + $0x90] sm:$0xff]
  %v40 = vld [vmem:[%s0 + $0x98] sm:$0xff]
  %v41 = vld [vmem:[%s0 + $0xa0] sm:$0xff]
  %v42 = vld [vmem:[%s0 + $0xa8] sm:$0xff]
  %v43 = vld [vmem:[%s0 + $0xb0] sm:$0xff]
  %v44 = vld [vmem:[%s0 + $0xb8] sm:$0xff]
  %v45 = vld [vmem:[%s0 + $0xc0] sm:$0xff]
  %v46 = vld [vmem:[%s0 + $0xc8] sm:$0xff]
  %v47 = vld [vmem:[%s0 + $0xd0] sm:$0xff]
  %v48 = vld [vmem:[%s0 + $0xd8] sm:$0xff]
  %v49 = vld [vmem:[%s0 + $0xe0] sm:$0xff]
  %v50 = vld [vmem:[%s0 + $0xe8] sm:$0xff]
  %v51 = vld [vmem:[%s0 + $0xf0] sm:$0xff]
  %v52 = vld [vmem:[%s0 + $0xf8] sm:$0xff]
  %v53 = vld [vmem:[%s0 + $0x100] sm:$0xff]
  %v54 = vld [vmem:[%s0 + $0x108] sm:$0xff]
  %v55 = vld [vmem:[%s0 + $0x110] sm:$0xff]
  %v56 = vld [vmem:[%s0 + $0x118] sm:$0xff]
  %v57 = vld [vmem:[%s0 + $0x120] sm:$0xff]
  %v58 = vld [vmem:[%s0 + $0x128] sm:$0xff]
  %v59 = vld [vmem:[%s0 + $0x130] sm:$0xff]
  %v60 = vld [vmem:[%s0 + $0x138] sm:$0xff]
  %v61 = vld [vmem:[%s0 + $0x140] sm:$0xff]
  %v62 = vld [vmem:[%s0 + $0x148] sm:$0xff]
  %v63 = vld [vmem:[%s0 + $0x150] sm:$0xff]
  %v64 = vld [vmem:[%s0 + $0x158] sm:$0xff]
  %v65 = vld [vmem:[%s0 + $0x160] sm:$0xff]
  %v66 = vld [vmem:[%s0 + $0x168] sm:$0xff]
  %v67 = vld [vmem:[%s0 + $0x170] sm:$0xff]
  %v68 = vld [vmem:[%s0 + $0x178] sm:$0xff]
  %v69 = vld [vmem:[%s0 + $0x180] sm:$0xff]
  %v70 = vld [vmem:[%s0 + $0x188] sm:$0xff]
  %v71 = vld [vmem:[%s0 + $0x190] sm:$0xff]
  %v72 = vld [vmem:[%s0 + $0x198] sm:$0xff]
  %v73 = vld [vmem:[%s0 + $0x1a0] sm:$0xff]
  %v74 = vld [vmem:[%s0 + $0x1a8] sm:$0xff]
  %v75 = vld [vmem:[%s0 + $0x1b0] sm:$0xff]
  %v76 = vld [vmem:[%s0 + $0x1b8] sm:$0xff]
  %v77 = vld [vmem:[%s0 + $0x1c0] sm:$0xff]
  %v78 = vld [vmem:[%s0 + $0x1c8] sm:$0xff]
  %v79 = vld [vmem:[%s0 + $0x1d0] sm:$0xff]
  %v80 = vld [vmem:[%s0 + $0x1d8] sm:$0xff]
  %v81 = vld [vmem:[%s0 + $0x1e0] sm:$0xff]
  %v82 = vld [vmem:[%s0 + $0x1e8] sm:$0xff]
  %v83 = vld [vmem:[%s0 + $0x1f0] sm:$0xff]
  %v84 = vld [vmem:[%s0 + $0x1f8] sm:$0xff]
  %v85 = vld [vmem:[%s1] sm:$0xf]
  %v86 = vld [vmem:[%s1 + $0x4] sm:$0xf]
  %v87 = vld [vmem:[%s1 + $0x8] sm:$0xf]
  %v88 = vld [vmem:[%s1 + $0xc] sm:$0xf]
  %v89 = vld [vmem:[%s1 + $0x10] sm:$0xf]
  %v90 = vld [vmem:[%s1 + $0x14] sm:$0xf]
  %v91 = vld [vmem:[%s1 + $0x18] sm:$0xf]
  %v92 = vld [vmem:[%s1 + $0x1c] sm:$0xf]
  %v93 = vld [vmem:[%s1 + $0x20] sm:$0xf]
  %v94 = vld [vmem:[%s1 + $0x24] sm:$0xf]
  %v95 = vld [vmem:[%s1 + $0x28] sm:$0xf]
  %v96 = vld [vmem:[%s1 + $0x2c] sm:$0xf]
  %v97 = vld [vmem:[%s1 + $0x30] sm:$0xf]
  %v98 = vld [vmem:[%s1 + $0x34] sm:$0xf]
  %v99 = vld [vmem:[%s1 + $0x38] sm:$0xf]
  %v100 = vld [vmem:[%s1 + $0x3c] sm:$0xf]
  %v101 = vld [vmem:[%s1 + $0x40] sm:$0xf]
  %v102 = vld [vmem:[%s1 + $0x44] sm:$0xf]
  %v103 = vld [vmem:[%s1 + $0x48] sm:$0x3]
  %v104 = vld [vmem:[%s2] sm:$0x1]
  %v106 = vperm.slane %v104, 0
  %v172 = vunpack.c.l.b16 %v21
  %v173 = vunpack.c.h.b16 %v21
  %v174 = vunpack.c.l.b16 %v22
  %v175 = vunpack.c.h.b16 %v22
  %v176 = vunpack.c.l.b16 %v23
  %v177 = vunpack.c.h.b16 %v23
  %v178 = vunpack.c.l.b16 %v24
  %v179 = vunpack.c.h.b16 %v24
  %v180 = vunpack.c.l.b16 %v25
  %v181 = vunpack.c.h.b16 %v25
  %v182 = vunpack.c.l.b16 %v26
  %v183 = vunpack.c.h.b16 %v26
  %v184 = vunpack.c.l.b16 %v27
  %v185 = vunpack.c.h.b16 %v27
  %v186 = vunpack.c.l.b16 %v28
  %v187 = vunpack.c.h.b16 %v28
  %v188 = vunpack.c.l.b16 %v29
  %v189 = vunpack.c.h.b16 %v29
  %v190 = vunpack.c.l.b16 %v30
  %v191 = vunpack.c.h.b16 %v30
  %v192 = vunpack.c.l.b16 %v31
  %v193 = vunpack.c.h.b16 %v31
  %v194 = vunpack.c.l.b16 %v32
  %v195 = vunpack.c.h.b16 %v32
  %v196 = vunpack.c.l.b16 %v33
  %v197 = vunpack.c.h.b16 %v33
  %v198 = vunpack.c.l.b16 %v34
  %v199 = vunpack.c.h.b16 %v34
  %v200 = vunpack.c.l.b16 %v35
  %v201 = vunpack.c.h.b16 %v35
  %v202 = vunpack.c.l.b16 %v36
  %v203 = vunpack.c.h.b16 %v36
  %v204 = vunpack.c.l.b16 %v37
  %v205 = vunpack.c.h.b16 %v37
  %v206 = vunpack.c.l.b16 %v38
  %v207 = vunpack.c.h.b16 %v38
  %v208 = vunpack.c.l.b16 %v39
  %v209 = vunpack.c.h.b16 %v39
  %v210 = vunpack.c.l.b16 %v40
  %v211 = vunpack.c.h.b16 %v40
  %v212 = vunpack.c.l.b16 %v41
  %v213 = vunpack.c.h.b16 %v41
  %v214 = vunpack.c.l.b16 %v42
  %v215 = vunpack.c.h.b16 %v42
  %v216 = vunpack.c.l.b16 %v43
  %v217 = vunpack.c.h.b16 %v43
  %v218 = vunpack.c.l.b16 %v44
  %v219 = vunpack.c.h.b16 %v44
  %v220 = vunpack.c.l.b16 %v45
  %v221 = vunpack.c.h.b16 %v45
  %v222 = vunpack.c.l.b16 %v46
  %v223 = vunpack.c.h.b16 %v46
  %v224 = vunpack.c.l.b16 %v47
  %v225 = vunpack.c.h.b16 %v47
  %v226 = vunpack.c.l.b16 %v48
  %v227 = vunpack.c.h.b16 %v48
  %v228 = vunpack.c.l.b16 %v49
  %v229 = vunpack.c.h.b16 %v49
  %v230 = vunpack.c.l.b16 %v50
  %v231 = vunpack.c.h.b16 %v50
  %v232 = vunpack.c.l.b16 %v51
  %v233 = vunpack.c.h.b16 %v51
  %v234 = vunpack.c.l.b16 %v52
  %v235 = vunpack.c.h.b16 %v52
  %v236 = vunpack.c.l.b16 %v53
  %v237 = vunpack.c.h.b16 %v53
  %v238 = vunpack.c.l.b16 %v54
  %v239 = vunpack.c.h.b16 %v54
  %v240 = vunpack.c.l.b16 %v55
  %v241 = vunpack.c.h.b16 %v55
  %v242 = vunpack.c.l.b16 %v56
  %v243 = vunpack.c.h.b16 %v56
  %v244 = vunpack.c.l.b16 %v57
  %v245 = vunpack.c.h.b16 %v57
  %v246 = vunpack.c.l.b16 %v58
  %v247 = vunpack.c.h.b16 %v58
  %v248 = vunpack.c.l.b16 %v59
  %v249 = vunpack.c.h.b16 %v59
  %v250 = vunpack.c.l.b16 %v60
  %v251 = vunpack.c.h.b16 %v60
  %v252 = vunpack.c.l.b16 %v61
  %v253 = vunpack.c.h.b16 %v61
  %v254 = vunpack.c.l.b16 %v62
  %v255 = vunpack.c.h.b16 %v62
  %v256 = vunpack.c.l.b16 %v63
  %v257 = vunpack.c.h.b16 %v63
  %v258 = vunpack.c.l.b16 %v64
  %v259 = vunpack.c.h.b16 %v64
  %v260 = vunpack.c.l.b16 %v65
  %v261 = vunpack.c.h.b16 %v65
  %v262 = vunpack.c.l.b16 %v66
  %v263 = vunpack.c.h.b16 %v66
  %v264 = vunpack.c.l.b16 %v67
  %v265 = vunpack.c.h.b16 %v67
  %v266 = vunpack.c.l.b16 %v68
  %v267 = vunpack.c.h.b16 %v68
  %v268 = vunpack.c.l.b16 %v69
  %v269 = vunpack.c.h.b16 %v69
  %v270 = vunpack.c.l.b16 %v70
  %v271 = vunpack.c.h.b16 %v70
  %v272 = vunpack.c.l.b16 %v71
  %v273 = vunpack.c.h.b16 %v71
  %v274 = vunpack.c.l.b16 %v72
  %v275 = vunpack.c.h.b16 %v72
  %v276 = vunpack.c.l.b16 %v73
  %v277 = vunpack.c.h.b16 %v73
  %v278 = vunpack.c.l.b16 %v74
  %v279 = vunpack.c.h.b16 %v74
  %v280 = vunpack.c.l.b16 %v75
  %v281 = vunpack.c.h.b16 %v75
  %v282 = vunpack.c.l.b16 %v76
  %v283 = vunpack.c.h.b16 %v76
  %v284 = vunpack.c.l.b16 %v77
  %v285 = vunpack.c.h.b16 %v77
  %v286 = vunpack.c.l.b16 %v78
  %v287 = vunpack.c.h.b16 %v78
  %v288 = vunpack.c.l.b16 %v79
  %v289 = vunpack.c.h.b16 %v79
  %v290 = vunpack.c.l.b16 %v80
  %v291 = vunpack.c.h.b16 %v80
  %v292 = vunpack.c.l.b16 %v81
  %v293 = vunpack.c.h.b16 %v81
  %v294 = vunpack.c.l.b16 %v82
  %v295 = vunpack.c.h.b16 %v82
  %v296 = vunpack.c.l.b16 %v83
  %v297 = vunpack.c.h.b16 %v83
  %v298 = vunpack.c.l.b16 %v84
  %v299 = vunpack.c.h.b16 %v84
  %v300 = vpack.c.b16 %v174, %v172
  %v301 = vpack.c.b16 %v175, %v173
  %v302 = vpack.c.b16 %v178, %v176
  %v303 = vpack.c.b16 %v179, %v177
  %v304 = vpack.c.b16 %v182, %v180
  %v305 = vpack.c.b16 %v183, %v181
  %v306 = vpack.c.b16 %v186, %v184
  %v307 = vpack.c.b16 %v187, %v185
  %v308 = vpack.c.b16 %v190, %v188
  %v309 = vpack.c.b16 %v191, %v189
  %v310 = vpack.c.b16 %v194, %v192
  %v311 = vpack.c.b16 %v195, %v193
  %v312 = vpack.c.b16 %v198, %v196
  %v313 = vpack.c.b16 %v199, %v197
  %v314 = vpack.c.b16 %v202, %v200
  %v315 = vpack.c.b16 %v203, %v201
  %v316 = vpack.c.b16 %v206, %v204
  %v317 = vpack.c.b16 %v207, %v205
  %v318 = vpack.c.b16 %v210, %v208
  %v319 = vpack.c.b16 %v211, %v209
  %v320 = vpack.c.b16 %v214, %v212
  %v321 = vpack.c.b16 %v215, %v213
  %v322 = vpack.c.b16 %v218, %v216
  %v323 = vpack.c.b16 %v219, %v217
  %v324 = vpack.c.b16 %v222, %v220
  %v325 = vpack.c.b16 %v223, %v221
  %v326 = vpack.c.b16 %v226, %v224
  %v327 = vpack.c.b16 %v227, %v225
  %v328 = vpack.c.b16 %v230, %v228
  %v329 = vpack.c.b16 %v231, %v229
  %v330 = vpack.c.b16 %v234, %v232
  %v331 = vpack.c.b16 %v235, %v233
  %v332 = vpack.c.b16 %v238, %v236
  %v333 = vpack.c.b16 %v239, %v237
  %v334 = vpack.c.b16 %v242, %v240
  %v335 = vpack.c.b16 %v243, %v241
  %v336 = vpack.c.b16 %v246, %v244
  %v337 = vpack.c.b16 %v247, %v245
  %v338 = vpack.c.b16 %v250, %v248
  %v339 = vpack.c.b16 %v251, %v249
  %v340 = vpack.c.b16 %v254, %v252
  %v341 = vpack.c.b16 %v255, %v253
  %v342 = vpack.c.b16 %v258, %v256
  %v343 = vpack.c.b16 %v259, %v257
  %v344 = vpack.c.b16 %v262, %v260
  %v345 = vpack.c.b16 %v263, %v261
  %v346 = vpack.c.b16 %v266, %v264
  %v347 = vpack.c.b16 %v267, %v265
  %v348 = vpack.c.b16 %v270, %v268
  %v349 = vpack.c.b16 %v271, %v269
  %v350 = vpack.c.b16 %v274, %v272
  %v351 = vpack.c.b16 %v275, %v273
  %v352 = vpack.c.b16 %v278, %v276
  %v353 = vpack.c.b16 %v279, %v277
  %v354 = vpack.c.b16 %v282, %v280
  %v355 = vpack.c.b16 %v283, %v281
  %v356 = vpack.c.b16 %v286, %v284
  %v357 = vpack.c.b16 %v287, %v285
  %v358 = vpack.c.b16 %v290, %v288
  %v359 = vpack.c.b16 %v291, %v289
  %v360 = vpack.c.b16 %v294, %v292
  %v361 = vpack.c.b16 %v295, %v293
  %v362 = vpack.c.b16 %v298, %v296
  %v363 = vpack.c.b16 %v299, %v297
  %v415 = vunpack.c.l.b16 %v85
  %v416 = vunpack.c.l.b16 %v86
  %v417 = vunpack.c.l.b16 %v87
  %v418 = vunpack.c.l.b16 %v88
  %v419 = vunpack.c.l.b16 %v89
  %v420 = vunpack.c.l.b16 %v90
  %v421 = vunpack.c.l.b16 %v91
  %v422 = vunpack.c.l.b16 %v92
  %v423 = vunpack.c.l.b16 %v93
  %v424 = vunpack.c.l.b16 %v94
  %v425 = vunpack.c.l.b16 %v95
  %v426 = vunpack.c.l.b16 %v96
  %v427 = vunpack.c.l.b16 %v97
  %v428 = vunpack.c.l.b16 %v98
  %v429 = vunpack.c.l.b16 %v99
  %v430 = vunpack.c.l.b16 %v100
  %v431 = vunpack.c.l.b16 %v101
  %v432 = vunpack.c.l.b16 %v102
  %v433 = vunpack.c.l.b16 %v103
  %v434 = vpack.c.b16 %v416, %v415
  %v435 = vpack.c.b16 %v418, %v417
  %v436 = vpack.c.b16 %v420, %v419
  %v437 = vpack.c.b16 %v422, %v421
  %v438 = vpack.c.b16 %v424, %v423
  %v439 = vpack.c.b16 %v426, %v425
  %v440 = vpack.c.b16 %v428, %v427
  %v441 = vpack.c.b16 %v430, %v429
  %v442 = vpack.c.b16 %v432, %v431
  %v443 = vpack.c.b16 %v433, %v433
  %vm453 = vcmask 154624
  %v455 = vsel %vm453, %v301, 0
  %v458 = vsel %vm453, %v303, 0
  %v461 = vsel %vm453, %v305, 0
  %v464 = vsel %vm453, %v307, 0
  %v467 = vsel %vm453, %v309, 0
  %v470 = vsel %vm453, %v311, 0
  %v473 = vsel %vm453, %v313, 0
  %v476 = vsel %vm453, %v315, 0
  %v479 = vsel %vm453, %v317, 0
  %v482 = vsel %vm453, %v319, 0
  %v485 = vsel %vm453, %v321, 0
  %v488 = vsel %vm453, %v323, 0
  %v491 = vsel %vm453, %v325, 0
  %v494 = vsel %vm453, %v327, 0
  %v497 = vsel %vm453, %v329, 0
  %v500 = vsel %vm453, %v331, 0
  %v503 = vsel %vm453, %v333, 0
  %v506 = vsel %vm453, %v335, 0
  %v509 = vsel %vm453, %v337, 0
  %v512 = vsel %vm453, %v339, 0
  %v515 = vsel %vm453, %v341, 0
  %v518 = vsel %vm453, %v343, 0
  %v521 = vsel %vm453, %v345, 0
  %v524 = vsel %vm453, %v347, 0
  %v527 = vsel %vm453, %v349, 0
  %v530 = vsel %vm453, %v351, 0
  %v533 = vsel %vm453, %v353, 0
  %v536 = vsel %vm453, %v355, 0
  %v539 = vsel %vm453, %v357, 0
  %v542 = vsel %vm453, %v359, 0
  %v545 = vsel %vm453, %v361, 0
  %v548 = vsel %vm453, %v363, 0
  %vm550 = vcmask 1040384
  %vm551 = vcmask 1041408
  %v552 = vsel %vm550, 4294967295, 65535
  %v553 = vsel %vm551, %v552, 0
  %v555 = vand.u32 %v443, %v553
  %557 = vmatpush.bf16.msra.mxu0 %v441
  %558 = vmatpush.bf16.msra.mxu0 %v440
  %559 = vmatpush.bf16.msra.mxu0 %v439
  %560 = vmatpush.bf16.msra.mxu0 %v438
  %561 = vmatpush.bf16.msra.mxu0 %v437
  %562 = vmatpush.bf16.msra.mxu0 %v436
  %563 = vmatpush.bf16.msra.mxu0 %v435
  %564 = vmatpush.bf16.msra.mxu0 %v434
  %565 = vmatmul.bf16.gmra.mxu0 %v300
  %v566 = vpop.f32.mrf.mxu0
  %v567 = vadd.f32 %v106, %v566
  %v568 = vpop.f32.mrf.mxu0
  %v569 = vadd.f32 %v106, %v568
  %570 = vmatmul.bf16.gmra.mxu0 %v302
  %v571 = vpop.f32.mrf.mxu0
  %v572 = vadd.f32 %v106, %v571
  %v573 = vpop.f32.mrf.mxu0
  %v574 = vadd.f32 %v106, %v573
  %575 = vmatmul.bf16.gmra.mxu0 %v304
  %v576 = vpop.f32.mrf.mxu0
  %v577 = vadd.f32 %v106, %v576
  %v578 = vpop.f32.mrf.mxu0
  %v579 = vadd.f32 %v106, %v578
  %580 = vmatmul.bf16.gmra.mxu0 %v306
  %v581 = vpop.f32.mrf.mxu0
  %v582 = vadd.f32 %v106, %v581
  %v583 = vpop.f32.mrf.mxu0
  %v584 = vadd.f32 %v106, %v583
  %585 = vmatmul.bf16.gmra.mxu0 %v308
  %v586 = vpop.f32.mrf.mxu0
  %v587 = vadd.f32 %v106, %v586
  %v588 = vpop.f32.mrf.mxu0
  %v589 = vadd.f32 %v106, %v588
  %590 = vmatmul.bf16.gmra.mxu0 %v310
  %v591 = vpop.f32.mrf.mxu0
  %v592 = vadd.f32 %v106, %v591
  %v593 = vpop.f32.mrf.mxu0
  %v594 = vadd.f32 %v106, %v593
  %595 = vmatmul.bf16.gmra.mxu0 %v312
  %v596 = vpop.f32.mrf.mxu0
  %v597 = vadd.f32 %v106, %v596
  %v598 = vpop.f32.mrf.mxu0
  %v599 = vadd.f32 %v106, %v598
  %600 = vmatmul.bf16.gmra.mxu0 %v314
  %v601 = vpop.f32.mrf.mxu0
  %v602 = vadd.f32 %v106, %v601
  %v603 = vpop.f32.mrf.mxu0
  %v604 = vadd.f32 %v106, %v603
  %605 = vmatmul.bf16.gmra.mxu0 %v316
  %v606 = vpop.f32.mrf.mxu0
  %v607 = vadd.f32 %v106, %v606
  %v608 = vpop.f32.mrf.mxu0
  %v609 = vadd.f32 %v106, %v608
  %610 = vmatmul.bf16.gmra.mxu0 %v318
  %v611 = vpop.f32.mrf.mxu0
  %v612 = vadd.f32 %v106, %v611
  %v613 = vpop.f32.mrf.mxu0
  %v614 = vadd.f32 %v106, %v613
  %615 = vmatmul.bf16.gmra.mxu0 %v320
  %v616 = vpop.f32.mrf.mxu0
  %v617 = vadd.f32 %v106, %v616
  %v618 = vpop.f32.mrf.mxu0
  %v619 = vadd.f32 %v106, %v618
  %620 = vmatmul.bf16.gmra.mxu0 %v322
  %v621 = vpop.f32.mrf.mxu0
  %v622 = vadd.f32 %v106, %v621
  %v623 = vpop.f32.mrf.mxu0
  %v624 = vadd.f32 %v106, %v623
  %625 = vmatmul.bf16.gmra.mxu0 %v324
  %v626 = vpop.f32.mrf.mxu0
  %v627 = vadd.f32 %v106, %v626
  %v628 = vpop.f32.mrf.mxu0
  %v629 = vadd.f32 %v106, %v628
  %630 = vmatmul.bf16.gmra.mxu0 %v326
  %v631 = vpop.f32.mrf.mxu0
  %v632 = vadd.f32 %v106, %v631
  %v633 = vpop.f32.mrf.mxu0
  %v634 = vadd.f32 %v106, %v633
  %635 = vmatmul.bf16.gmra.mxu0 %v328
  %v636 = vpop.f32.mrf.mxu0
  %v637 = vadd.f32 %v106, %v636
  %v638 = vpop.f32.mrf.mxu0
  %v639 = vadd.f32 %v106, %v638
  %640 = vmatmul.bf16.gmra.mxu0 %v330
  %v641 = vpop.f32.mrf.mxu0
  %v642 = vadd.f32 %v106, %v641
  %v643 = vpop.f32.mrf.mxu0
  %v644 = vadd.f32 %v106, %v643
  %645 = vmatmul.bf16.gmra.mxu0 %v332
  %v646 = vpop.f32.mrf.mxu0
  %v647 = vadd.f32 %v106, %v646
  %v648 = vpop.f32.mrf.mxu0
  %v649 = vadd.f32 %v106, %v648
  %650 = vmatmul.bf16.gmra.mxu0 %v334
  %v651 = vpop.f32.mrf.mxu0
  %v652 = vadd.f32 %v106, %v651
  %v653 = vpop.f32.mrf.mxu0
  %v654 = vadd.f32 %v106, %v653
  %655 = vmatmul.bf16.gmra.mxu0 %v336
  %v656 = vpop.f32.mrf.mxu0
  %v657 = vadd.f32 %v106, %v656
  %v658 = vpop.f32.mrf.mxu0
  %v659 = vadd.f32 %v106, %v658
  %660 = vmatmul.bf16.gmra.mxu0 %v338
  %v661 = vpop.f32.mrf.mxu0
  %v662 = vadd.f32 %v106, %v661
  %v663 = vpop.f32.mrf.mxu0
  %v664 = vadd.f32 %v106, %v663
  %665 = vmatmul.bf16.gmra.mxu0 %v340
  %v666 = vpop.f32.mrf.mxu0
  %v667 = vadd.f32 %v106, %v666
  %v668 = vpop.f32.mrf.mxu0
  %v669 = vadd.f32 %v106, %v668
  %670 = vmatmul.bf16.gmra.mxu0 %v342
  %v671 = vpop.f32.mrf.mxu0
  %v672 = vadd.f32 %v106, %v671
  %v673 = vpop.f32.mrf.mxu0
  %v674 = vadd.f32 %v106, %v673
  %675 = vmatmul.bf16.gmra.mxu0 %v344
  %v676 = vpop.f32.mrf.mxu0
  %v677 = vadd.f32 %v106, %v676
  %v678 = vpop.f32.mrf.mxu0
  %v679 = vadd.f32 %v106, %v678
  %680 = vmatmul.bf16.gmra.mxu0 %v346
  %v681 = vpop.f32.mrf.mxu0
  %v682 = vadd.f32 %v106, %v681
  %v683 = vpop.f32.mrf.mxu0
  %v684 = vadd.f32 %v106, %v683
  %685 = vmatmul.bf16.gmra.mxu0 %v348
  %v686 = vpop.f32.mrf.mxu0
  %v687 = vadd.f32 %v106, %v686
  %v688 = vpop.f32.mrf.mxu0
  %v689 = vadd.f32 %v106, %v688
  %690 = vmatmul.bf16.gmra.mxu0 %v350
  %v691 = vpop.f32.mrf.mxu0
  %v692 = vadd.f32 %v106, %v691
  %v693 = vpop.f32.mrf.mxu0
  %v694 = vadd.f32 %v106, %v693
  %695 = vmatmul.bf16.gmra.mxu0 %v352
  %v696 = vpop.f32.mrf.mxu0
  %v697 = vadd.f32 %v106, %v696
  %v698 = vpop.f32.mrf.mxu0
  %v699 = vadd.f32 %v106, %v698
  %700 = vmatmul.bf16.gmra.mxu0 %v354
  %v701 = vpop.f32.mrf.mxu0
  %v702 = vadd.f32 %v106, %v701
  %v703 = vpop.f32.mrf.mxu0
  %v704 = vadd.f32 %v106, %v703
  %705 = vmatmul.bf16.gmra.mxu0 %v356
  %v706 = vpop.f32.mrf.mxu0
  %v707 = vadd.f32 %v106, %v706
  %v708 = vpop.f32.mrf.mxu0
  %v709 = vadd.f32 %v106, %v708
  %710 = vmatmul.bf16.gmra.mxu0 %v358
  %v711 = vpop.f32.mrf.mxu0
  %v712 = vadd.f32 %v106, %v711
  %v713 = vpop.f32.mrf.mxu0
  %v714 = vadd.f32 %v106, %v713
  %715 = vmatmul.bf16.gmra.mxu0 %v360
  %v716 = vpop.f32.mrf.mxu0
  %v717 = vadd.f32 %v106, %v716
  %v718 = vpop.f32.mrf.mxu0
  %v719 = vadd.f32 %v106, %v718
  %720 = vmatmul.bf16.gmra.mxu0 %v362
  %v721 = vpop.f32.mrf.mxu0
  %v722 = vadd.f32 %v106, %v721
  %v723 = vpop.f32.mrf.mxu0
  %v724 = vadd.f32 %v106, %v723
  %725 = vdwg.mxu0
  %726 = vmatpush.bf16.msra.mxu0 0
  %727 = vmatpush.bf16.msra.mxu0 0
  %728 = vmatpush.bf16.msra.mxu0 0
  %729 = vmatpush.bf16.msra.mxu0 0
  %730 = vmatpush.bf16.msra.mxu0 0
  %731 = vmatpush.bf16.msra.mxu0 0
  %732 = vmatpush.bf16.msra.mxu0 %v555
  %733 = vmatpush.bf16.msra.mxu0 %v442
  %734 = vmatmul.bf16.gmra.mxu0 %v455
  %v735 = vpop.f32.mrf.mxu0
  %v736 = vadd.f32 %v567, %v735
  %v737 = vpop.f32.mrf.mxu0
  %v738 = vadd.f32 %v569, %v737
  %739 = vmatmul.bf16.gmra.mxu0 %v458
  %v740 = vpop.f32.mrf.mxu0
  %v741 = vadd.f32 %v572, %v740
  %v742 = vpop.f32.mrf.mxu0
  %v743 = vadd.f32 %v574, %v742
  %744 = vmatmul.bf16.gmra.mxu0 %v461
  %v745 = vpop.f32.mrf.mxu0
  %v746 = vadd.f32 %v577, %v745
  %v747 = vpop.f32.mrf.mxu0
  %v748 = vadd.f32 %v579, %v747
  %749 = vmatmul.bf16.gmra.mxu0 %v464
  %v750 = vpop.f32.mrf.mxu0
  %v751 = vadd.f32 %v582, %v750
  %v752 = vpop.f32.mrf.mxu0
  %v753 = vadd.f32 %v584, %v752
  %754 = vmatmul.bf16.gmra.mxu0 %v467
  %v755 = vpop.f32.mrf.mxu0
  %v756 = vadd.f32 %v587, %v755
  %v757 = vpop.f32.mrf.mxu0
  %v758 = vadd.f32 %v589, %v757
  %759 = vmatmul.bf16.gmra.mxu0 %v470
  %v760 = vpop.f32.mrf.mxu0
  %v761 = vadd.f32 %v592, %v760
  %v762 = vpop.f32.mrf.mxu0
  %v763 = vadd.f32 %v594, %v762
  %764 = vmatmul.bf16.gmra.mxu0 %v473
  %v765 = vpop.f32.mrf.mxu0
  %v766 = vadd.f32 %v597, %v765
  %v767 = vpop.f32.mrf.mxu0
  %v768 = vadd.f32 %v599, %v767
  %769 = vmatmul.bf16.gmra.mxu0 %v476
  %v770 = vpop.f32.mrf.mxu0
  %v771 = vadd.f32 %v602, %v770
  %v772 = vpop.f32.mrf.mxu0
  %v773 = vadd.f32 %v604, %v772
  %774 = vmatmul.bf16.gmra.mxu0 %v479
  %v775 = vpop.f32.mrf.mxu0
  %v776 = vadd.f32 %v607, %v775
  %v777 = vpop.f32.mrf.mxu0
  %v778 = vadd.f32 %v609, %v777
  %779 = vmatmul.bf16.gmra.mxu0 %v482
  %v780 = vpop.f32.mrf.mxu0
  %v781 = vadd.f32 %v612, %v780
  %v782 = vpop.f32.mrf.mxu0
  %v783 = vadd.f32 %v614, %v782
  %784 = vmatmul.bf16.gmra.mxu0 %v485
  %v785 = vpop.f32.mrf.mxu0
  %v786 = vadd.f32 %v617, %v785
  %v787 = vpop.f32.mrf.mxu0
  %v788 = vadd.f32 %v619, %v787
  %789 = vmatmul.bf16.gmra.mxu0 %v488
  %v790 = vpop.f32.mrf.mxu0
  %v791 = vadd.f32 %v622, %v790
  %v792 = vpop.f32.mrf.mxu0
  %v793 = vadd.f32 %v624, %v792
  %794 = vmatmul.bf16.gmra.mxu0 %v491
  %v795 = vpop.f32.mrf.mxu0
  %v796 = vadd.f32 %v627, %v795
  %v797 = vpop.f32.mrf.mxu0
  %v798 = vadd.f32 %v629, %v797
  %799 = vmatmul.bf16.gmra.mxu0 %v494
  %v800 = vpop.f32.mrf.mxu0
  %v801 = vadd.f32 %v632, %v800
  %v802 = vpop.f32.mrf.mxu0
  %v803 = vadd.f32 %v634, %v802
  %804 = vmatmul.bf16.gmra.mxu0 %v497
  %v805 = vpop.f32.mrf.mxu0
  %v806 = vadd.f32 %v637, %v805
  %v807 = vpop.f32.mrf.mxu0
  %v808 = vadd.f32 %v639, %v807
  %809 = vmatmul.bf16.gmra.mxu0 %v500
  %v810 = vpop.f32.mrf.mxu0
  %v811 = vadd.f32 %v642, %v810
  %v812 = vpop.f32.mrf.mxu0
  %v813 = vadd.f32 %v644, %v812
  %814 = vmatmul.bf16.gmra.mxu0 %v503
  %v815 = vpop.f32.mrf.mxu0
  %v816 = vadd.f32 %v647, %v815
  %v817 = vpop.f32.mrf.mxu0
  %v818 = vadd.f32 %v649, %v817
  %819 = vmatmul.bf16.gmra.mxu0 %v506
  %v820 = vpop.f32.mrf.mxu0
  %v821 = vadd.f32 %v652, %v820
  %v822 = vpop.f32.mrf.mxu0
  %v823 = vadd.f32 %v654, %v822
  %824 = vmatmul.bf16.gmra.mxu0 %v509
  %v825 = vpop.f32.mrf.mxu0
  %v826 = vadd.f32 %v657, %v825
  %v827 = vpop.f32.mrf.mxu0
  %v828 = vadd.f32 %v659, %v827
  %829 = vmatmul.bf16.gmra.mxu0 %v512
  %v830 = vpop.f32.mrf.mxu0
  %v831 = vadd.f32 %v662, %v830
  %v832 = vpop.f32.mrf.mxu0
  %v833 = vadd.f32 %v664, %v832
  %834 = vmatmul.bf16.gmra.mxu0 %v515
  %v835 = vpop.f32.mrf.mxu0
  %v836 = vadd.f32 %v667, %v835
  %v837 = vpop.f32.mrf.mxu0
  %v838 = vadd.f32 %v669, %v837
  %839 = vmatmul.bf16.gmra.mxu0 %v518
  %v840 = vpop.f32.mrf.mxu0
  %v841 = vadd.f32 %v672, %v840
  %v842 = vpop.f32.mrf.mxu0
  %v843 = vadd.f32 %v674, %v842
  %844 = vmatmul.bf16.gmra.mxu0 %v521
  %v845 = vpop.f32.mrf.mxu0
  %v846 = vadd.f32 %v677, %v845
  %v847 = vpop.f32.mrf.mxu0
  %v848 = vadd.f32 %v679, %v847
  %849 = vmatmul.bf16.gmra.mxu0 %v524
  %v850 = vpop.f32.mrf.mxu0
  %v851 = vadd.f32 %v682, %v850
  %v852 = vpop.f32.mrf.mxu0
  %v853 = vadd.f32 %v684, %v852
  %854 = vmatmul.bf16.gmra.mxu0 %v527
  %v855 = vpop.f32.mrf.mxu0
  %v856 = vadd.f32 %v687, %v855
  %v857 = vpop.f32.mrf.mxu0
  %v858 = vadd.f32 %v689, %v857
  %859 = vmatmul.bf16.gmra.mxu0 %v530
  %v860 = vpop.f32.mrf.mxu0
  %v861 = vadd.f32 %v692, %v860
  %v862 = vpop.f32.mrf.mxu0
  %v863 = vadd.f32 %v694, %v862
  %864 = vmatmul.bf16.gmra.mxu0 %v533
  %v865 = vpop.f32.mrf.mxu0
  %v866 = vadd.f32 %v697, %v865
  %v867 = vpop.f32.mrf.mxu0
  %v868 = vadd.f32 %v699, %v867
  %869 = vmatmul.bf16.gmra.mxu0 %v536
  %v870 = vpop.f32.mrf.mxu0
  %v871 = vadd.f32 %v702, %v870
  %v872 = vpop.f32.mrf.mxu0
  %v873 = vadd.f32 %v704, %v872
  %874 = vmatmul.bf16.gmra.mxu0 %v539
  %v875 = vpop.f32.mrf.mxu0
  %v876 = vadd.f32 %v707, %v875
  %v877 = vpop.f32.mrf.mxu0
  %v878 = vadd.f32 %v709, %v877
  %879 = vmatmul.bf16.gmra.mxu0 %v542
  %v880 = vpop.f32.mrf.mxu0
  %v881 = vadd.f32 %v712, %v880
  %v882 = vpop.f32.mrf.mxu0
  %v883 = vadd.f32 %v714, %v882
  %884 = vmatmul.bf16.gmra.mxu0 %v545
  %v885 = vpop.f32.mrf.mxu0
  %v886 = vadd.f32 %v717, %v885
  %v887 = vpop.f32.mrf.mxu0
  %v888 = vadd.f32 %v719, %v887
  %889 = vmatmul.bf16.gmra.mxu0 %v548
  %v890 = vpop.f32.mrf.mxu0
  %v891 = vadd.f32 %v722, %v890
  %v892 = vpop.f32.mrf.mxu0
  %v893 = vadd.f32 %v724, %v892
  %894 = vdwg.mxu0
  %vm895 = vcmask 523264
  %v896 = vsel %vm895, %v736, 0.0
  %897 = vadd.xlane.f32.xlu0 %v896
  %v898 = vpop.xlane.xlu0 %897
  %v899 = vsel %vm895, %v738, 0.0
  %900 = vadd.xlane.f32.xlu0 %v899
  %v901 = vpop.xlane.xlu0 %900
  %v902 = vsel %vm895, %v741, 0.0
  %903 = vadd.xlane.f32.xlu0 %v902
  %v904 = vpop.xlane.xlu0 %903
  %v905 = vsel %vm895, %v743, 0.0
  %906 = vadd.xlane.f32.xlu0 %v905
  %v907 = vpop.xlane.xlu0 %906
  %v908 = vsel %vm895, %v746, 0.0
  %909 = vadd.xlane.f32.xlu0 %v908
  %v910 = vpop.xlane.xlu0 %909
  %v911 = vsel %vm895, %v748, 0.0
  %912 = vadd.xlane.f32.xlu0 %v911
  %v913 = vpop.xlane.xlu0 %912
  %v914 = vsel %vm895, %v751, 0.0
  %915 = vadd.xlane.f32.xlu0 %v914
  %v916 = vpop.xlane.xlu0 %915
  %v917 = vsel %vm895, %v753, 0.0
  %918 = vadd.xlane.f32.xlu0 %v917
  %v919 = vpop.xlane.xlu0 %918
  %v920 = vsel %vm895, %v756, 0.0
  %921 = vadd.xlane.f32.xlu0 %v920
  %v922 = vpop.xlane.xlu0 %921
  %v923 = vsel %vm895, %v758, 0.0
  %924 = vadd.xlane.f32.xlu0 %v923
  %v925 = vpop.xlane.xlu0 %924
  %v926 = vsel %vm895, %v761, 0.0
  %927 = vadd.xlane.f32.xlu0 %v926
  %v928 = vpop.xlane.xlu0 %927
  %v929 = vsel %vm895, %v763, 0.0
  %930 = vadd.xlane.f32.xlu0 %v929
  %v931 = vpop.xlane.xlu0 %930
  %v932 = vsel %vm895, %v766, 0.0
  %933 = vadd.xlane.f32.xlu0 %v932
  %v934 = vpop.xlane.xlu0 %933
  %v935 = vsel %vm895, %v768, 0.0
  %936 = vadd.xlane.f32.xlu0 %v935
  %v937 = vpop.xlane.xlu0 %936
  %v938 = vsel %vm895, %v771, 0.0
  %939 = vadd.xlane.f32.xlu0 %v938
  %v940 = vpop.xlane.xlu0 %939
  %v941 = vsel %vm895, %v773, 0.0
  %942 = vadd.xlane.f32.xlu0 %v941
  %v943 = vpop.xlane.xlu0 %942
  %v944 = vsel %vm895, %v776, 0.0
  %945 = vadd.xlane.f32.xlu0 %v944
  %v946 = vpop.xlane.xlu0 %945
  %v947 = vsel %vm895, %v778, 0.0
  %948 = vadd.xlane.f32.xlu0 %v947
  %v949 = vpop.xlane.xlu0 %948
  %v950 = vsel %vm895, %v781, 0.0
  %951 = vadd.xlane.f32.xlu0 %v950
  %v952 = vpop.xlane.xlu0 %951
  %v953 = vsel %vm895, %v783, 0.0
  %954 = vadd.xlane.f32.xlu0 %v953
  %v955 = vpop.xlane.xlu0 %954
  %v956 = vsel %vm895, %v786, 0.0
  %957 = vadd.xlane.f32.xlu0 %v956
  %v958 = vpop.xlane.xlu0 %957
  %v959 = vsel %vm895, %v788, 0.0
  %960 = vadd.xlane.f32.xlu0 %v959
  %v961 = vpop.xlane.xlu0 %960
  %v962 = vsel %vm895, %v791, 0.0
  %963 = vadd.xlane.f32.xlu0 %v962
  %v964 = vpop.xlane.xlu0 %963
  %v965 = vsel %vm895, %v793, 0.0
  %966 = vadd.xlane.f32.xlu0 %v965
  %v967 = vpop.xlane.xlu0 %966
  %v968 = vsel %vm895, %v796, 0.0
  %969 = vadd.xlane.f32.xlu0 %v968
  %v970 = vpop.xlane.xlu0 %969
  %v971 = vsel %vm895, %v798, 0.0
  %972 = vadd.xlane.f32.xlu0 %v971
  %v973 = vpop.xlane.xlu0 %972
  %v974 = vsel %vm895, %v801, 0.0
  %975 = vadd.xlane.f32.xlu0 %v974
  %v976 = vpop.xlane.xlu0 %975
  %v977 = vsel %vm895, %v803, 0.0
  %978 = vadd.xlane.f32.xlu0 %v977
  %v979 = vpop.xlane.xlu0 %978
  %v980 = vsel %vm895, %v806, 0.0
  %981 = vadd.xlane.f32.xlu0 %v980
  %v982 = vpop.xlane.xlu0 %981
  %v983 = vsel %vm895, %v808, 0.0
  %984 = vadd.xlane.f32.xlu0 %v983
  %v985 = vpop.xlane.xlu0 %984
  %v986 = vsel %vm895, %v811, 0.0
  %987 = vadd.xlane.f32.xlu0 %v986
  %v988 = vpop.xlane.xlu0 %987
  %v989 = vsel %vm895, %v813, 0.0
  %990 = vadd.xlane.f32.xlu0 %v989
  %v991 = vpop.xlane.xlu0 %990
  %v992 = vsel %vm895, %v816, 0.0
  %993 = vadd.xlane.f32.xlu0 %v992
  %v994 = vpop.xlane.xlu0 %993
  %v995 = vsel %vm895, %v818, 0.0
  %996 = vadd.xlane.f32.xlu0 %v995
  %v997 = vpop.xlane.xlu0 %996
  %v998 = vsel %vm895, %v821, 0.0
  %999 = vadd.xlane.f32.xlu0 %v998
  %v1000 = vpop.xlane.xlu0 %999
  %v1001 = vsel %vm895, %v823, 0.0
  %1002 = vadd.xlane.f32.xlu0 %v1001
  %v1003 = vpop.xlane.xlu0 %1002
  %v1004 = vsel %vm895, %v826, 0.0
  %1005 = vadd.xlane.f32.xlu0 %v1004
  %v1006 = vpop.xlane.xlu0 %1005
  %v1007 = vsel %vm895, %v828, 0.0
  %1008 = vadd.xlane.f32.xlu0 %v1007
  %v1009 = vpop.xlane.xlu0 %1008
  %v1010 = vsel %vm895, %v831, 0.0
  %1011 = vadd.xlane.f32.xlu0 %v1010
  %v1012 = vpop.xlane.xlu0 %1011
  %v1013 = vsel %vm895, %v833, 0.0
  %1014 = vadd.xlane.f32.xlu0 %v1013
  %v1015 = vpop.xlane.xlu0 %1014
  %v1016 = vsel %vm895, %v836, 0.0
  %1017 = vadd.xlane.f32.xlu0 %v1016
  %v1018 = vpop.xlane.xlu0 %1017
  %v1019 = vsel %vm895, %v838, 0.0
  %1020 = vadd.xlane.f32.xlu0 %v1019
  %v1021 = vpop.xlane.xlu0 %1020
  %v1022 = vsel %vm895, %v841, 0.0
  %1023 = vadd.xlane.f32.xlu0 %v1022
  %v1024 = vpop.xlane.xlu0 %1023
  %v1025 = vsel %vm895, %v843, 0.0
  %1026 = vadd.xlane.f32.xlu0 %v1025
  %v1027 = vpop.xlane.xlu0 %1026
  %v1028 = vsel %vm895, %v846, 0.0
  %1029 = vadd.xlane.f32.xlu0 %v1028
  %v1030 = vpop.xlane.xlu0 %1029
  %v1031 = vsel %vm895, %v848, 0.0
  %1032 = vadd.xlane.f32.xlu0 %v1031
  %v1033 = vpop.xlane.xlu0 %1032
  %v1034 = vsel %vm895, %v851, 0.0
  %1035 = vadd.xlane.f32.xlu0 %v1034
  %v1036 = vpop.xlane.xlu0 %1035
  %v1037 = vsel %vm895, %v853, 0.0
  %1038 = vadd.xlane.f32.xlu0 %v1037
  %v1039 = vpop.xlane.xlu0 %1038
  %v1040 = vsel %vm895, %v856, 0.0
  %1041 = vadd.xlane.f32.xlu0 %v1040
  %v1042 = vpop.xlane.xlu0 %1041
  %v1043 = vsel %vm895, %v858, 0.0
  %1044 = vadd.xlane.f32.xlu0 %v1043
  %v1045 = vpop.xlane.xlu0 %1044
  %v1046 = vsel %vm895, %v861, 0.0
  %1047 = vadd.xlane.f32.xlu0 %v1046
  %v1048 = vpop.xlane.xlu0 %1047
  %v1049 = vsel %vm895, %v863, 0.0
  %1050 = vadd.xlane.f32.xlu0 %v1049
  %v1051 = vpop.xlane.xlu0 %1050
  %v1052 = vsel %vm895, %v866, 0.0
  %1053 = vadd.xlane.f32.xlu0 %v1052
  %v1054 = vpop.xlane.xlu0 %1053
  %v1055 = vsel %vm895, %v868, 0.0
  %1056 = vadd.xlane.f32.xlu0 %v1055
  %v1057 = vpop.xlane.xlu0 %1056
  %v1058 = vsel %vm895, %v871, 0.0
  %1059 = vadd.xlane.f32.xlu0 %v1058
  %v1060 = vpop.xlane.xlu0 %1059
  %v1061 = vsel %vm895, %v873, 0.0
  %1062 = vadd.xlane.f32.xlu0 %v1061
  %v1063 = vpop.xlane.xlu0 %1062
  %v1064 = vsel %vm895, %v876, 0.0
  %1065 = vadd.xlane.f32.xlu0 %v1064
  %v1066 = vpop.xlane.xlu0 %1065
  %v1067 = vsel %vm895, %v878, 0.0
  %1068 = vadd.xlane.f32.xlu0 %v1067
  %v1069 = vpop.xlane.xlu0 %1068
  %v1070 = vsel %vm895, %v881, 0.0
  %1071 = vadd.xlane.f32.xlu0 %v1070
  %v1072 = vpop.xlane.xlu0 %1071
  %v1073 = vsel %vm895, %v883, 0.0
  %1074 = vadd.xlane.f32.xlu0 %v1073
  %v1075 = vpop.xlane.xlu0 %1074
  %v1076 = vsel %vm895, %v886, 0.0
  %1077 = vadd.xlane.f32.xlu0 %v1076
  %v1078 = vpop.xlane.xlu0 %1077
  %v1079 = vsel %vm895, %v888, 0.0
  %1080 = vadd.xlane.f32.xlu0 %v1079
  %v1081 = vpop.xlane.xlu0 %1080
  %v1082 = vsel %vm895, %v891, 0.0
  %1083 = vadd.xlane.f32.xlu0 %v1082
  %v1084 = vpop.xlane.xlu0 %1083
  %v1085 = vsel %vm895, %v893, 0.0
  %1086 = vadd.xlane.f32.xlu0 %v1085
  %v1087 = vpop.xlane.xlu0 %1086
  %v1088 = vrcp.pop 64.0
  %v1089 = vmul.f32 64.0, %v1088
  %v1090 = vsub.f32 1.0, %v1089
  %v1091 = vmul.f32 %v1088, %v1090
  %v1092 = vadd.f32 %v1088, %v1091
  %vm1093 = vweird.f32 %v1088
  %v1094 = vsel %vm1093, %v1088, %v1092
  %v1095 = vmul.f32 %v898, %v1094
  %v1096 = vmul.f32 %v901, %v1094
  %v1097 = vmul.f32 %v904, %v1094
  %v1098 = vmul.f32 %v907, %v1094
  %v1099 = vmul.f32 %v910, %v1094
  %v1100 = vmul.f32 %v913, %v1094
  %v1101 = vmul.f32 %v916, %v1094
  %v1102 = vmul.f32 %v919, %v1094
  %v1103 = vmul.f32 %v922, %v1094
  %v1104 = vmul.f32 %v925, %v1094
  %v1105 = vmul.f32 %v928, %v1094
  %v1106 = vmul.f32 %v931, %v1094
  %v1107 = vmul.f32 %v934, %v1094
  %v1108 = vmul.f32 %v937, %v1094
  %v1109 = vmul.f32 %v940, %v1094
  %v1110 = vmul.f32 %v943, %v1094
  %v1111 = vmul.f32 %v946, %v1094
  %v1112 = vmul.f32 %v949, %v1094
  %v1113 = vmul.f32 %v952, %v1094
  %v1114 = vmul.f32 %v955, %v1094
  %v1115 = vmul.f32 %v958, %v1094
  %v1116 = vmul.f32 %v961, %v1094
  %v1117 = vmul.f32 %v964, %v1094
  %v1118 = vmul.f32 %v967, %v1094
  %v1119 = vmul.f32 %v970, %v1094
  %v1120 = vmul.f32 %v973, %v1094
  %v1121 = vmul.f32 %v976, %v1094
  %v1122 = vmul.f32 %v979, %v1094
  %v1123 = vmul.f32 %v982, %v1094
  %v1124 = vmul.f32 %v985, %v1094
  %v1125 = vmul.f32 %v988, %v1094
  %v1126 = vmul.f32 %v991, %v1094
  %v1127 = vmul.f32 %v994, %v1094
  %v1128 = vmul.f32 %v997, %v1094
  %v1129 = vmul.f32 %v1000, %v1094
  %v1130 = vmul.f32 %v1003, %v1094
  %v1131 = vmul.f32 %v1006, %v1094
  %v1132 = vmul.f32 %v1009, %v1094
  %v1133 = vmul.f32 %v1012, %v1094
  %v1134 = vmul.f32 %v1015, %v1094
  %v1135 = vmul.f32 %v1018, %v1094
  %v1136 = vmul.f32 %v1021, %v1094
  %v1137 = vmul.f32 %v1024, %v1094
  %v1138 = vmul.f32 %v1027, %v1094
  %v1139 = vmul.f32 %v1030, %v1094
  %v1140 = vmul.f32 %v1033, %v1094
  %v1141 = vmul.f32 %v1036, %v1094
  %v1142 = vmul.f32 %v1039, %v1094
  %v1143 = vmul.f32 %v1042, %v1094
  %v1144 = vmul.f32 %v1045, %v1094
  %v1145 = vmul.f32 %v1048, %v1094
  %v1146 = vmul.f32 %v1051, %v1094
  %v1147 = vmul.f32 %v1054, %v1094
  %v1148 = vmul.f32 %v1057, %v1094
  %v1149 = vmul.f32 %v1060, %v1094
  %v1150 = vmul.f32 %v1063, %v1094
  %v1151 = vmul.f32 %v1066, %v1094
  %v1152 = vmul.f32 %v1069, %v1094
  %v1153 = vmul.f32 %v1072, %v1094
  %v1154 = vmul.f32 %v1075, %v1094
  %v1155 = vmul.f32 %v1078, %v1094
  %v1156 = vmul.f32 %v1081, %v1094
  %v1157 = vmul.f32 %v1084, %v1094
  %v1158 = vmul.f32 %v1087, %v1094
  %v1159 = vsub.f32 %v736, %v1095
  %v1160 = vsub.f32 %v738, %v1096
  %v1161 = vsub.f32 %v741, %v1097
  %v1162 = vsub.f32 %v743, %v1098
  %v1163 = vsub.f32 %v746, %v1099
  %v1164 = vsub.f32 %v748, %v1100
  %v1165 = vsub.f32 %v751, %v1101
  %v1166 = vsub.f32 %v753, %v1102
  %v1167 = vsub.f32 %v756, %v1103
  %v1168 = vsub.f32 %v758, %v1104
  %v1169 = vsub.f32 %v761, %v1105
  %v1170 = vsub.f32 %v763, %v1106
  %v1171 = vsub.f32 %v766, %v1107
  %v1172 = vsub.f32 %v768, %v1108
  %v1173 = vsub.f32 %v771, %v1109
  %v1174 = vsub.f32 %v773, %v1110
  %v1175 = vsub.f32 %v776, %v1111
  %v1176 = vsub.f32 %v778, %v1112
  %v1177 = vsub.f32 %v781, %v1113
  %v1178 = vsub.f32 %v783, %v1114
  %v1179 = vsub.f32 %v786, %v1115
  %v1180 = vsub.f32 %v788, %v1116
  %v1181 = vsub.f32 %v791, %v1117
  %v1182 = vsub.f32 %v793, %v1118
  %v1183 = vsub.f32 %v796, %v1119
  %v1184 = vsub.f32 %v798, %v1120
  %v1185 = vsub.f32 %v801, %v1121
  %v1186 = vsub.f32 %v803, %v1122
  %v1187 = vsub.f32 %v806, %v1123
  %v1188 = vsub.f32 %v808, %v1124
  %v1189 = vsub.f32 %v811, %v1125
  %v1190 = vsub.f32 %v813, %v1126
  %v1191 = vsub.f32 %v816, %v1127
  %v1192 = vsub.f32 %v818, %v1128
  %v1193 = vsub.f32 %v821, %v1129
  %v1194 = vsub.f32 %v823, %v1130
  %v1195 = vsub.f32 %v826, %v1131
  %v1196 = vsub.f32 %v828, %v1132
  %v1197 = vsub.f32 %v831, %v1133
  %v1198 = vsub.f32 %v833, %v1134
  %v1199 = vsub.f32 %v836, %v1135
  %v1200 = vsub.f32 %v838, %v1136
  %v1201 = vsub.f32 %v841, %v1137
  %v1202 = vsub.f32 %v843, %v1138
  %v1203 = vsub.f32 %v846, %v1139
  %v1204 = vsub.f32 %v848, %v1140
  %v1205 = vsub.f32 %v851, %v1141
  %v1206 = vsub.f32 %v853, %v1142
  %v1207 = vsub.f32 %v856, %v1143
  %v1208 = vsub.f32 %v858, %v1144
  %v1209 = vsub.f32 %v861, %v1145
  %v1210 = vsub.f32 %v863, %v1146
  %v1211 = vsub.f32 %v866, %v1147
  %v1212 = vsub.f32 %v868, %v1148
  %v1213 = vsub.f32 %v871, %v1149
  %v1214 = vsub.f32 %v873, %v1150
  %v1215 = vsub.f32 %v876, %v1151
  %v1216 = vsub.f32 %v878, %v1152
  %v1217 = vsub.f32 %v881, %v1153
  %v1218 = vsub.f32 %v883, %v1154
  %v1219 = vsub.f32 %v886, %v1155
  %v1220 = vsub.f32 %v888, %v1156
  %v1221 = vsub.f32 %v891, %v1157
  %v1222 = vsub.f32 %v893, %v1158
  %v1223 = vmul.f32 %v1159, %v1159
  %v1224 = vmul.f32 %v1160, %v1160
  %v1225 = vmul.f32 %v1161, %v1161
  %v1226 = vmul.f32 %v1162, %v1162
  %v1227 = vmul.f32 %v1163, %v1163
  %v1228 = vmul.f32 %v1164, %v1164
  %v1229 = vmul.f32 %v1165, %v1165
  %v1230 = vmul.f32 %v1166, %v1166
  %v1231 = vmul.f32 %v1167, %v1167
  %v1232 = vmul.f32 %v1168, %v1168
  %v1233 = vmul.f32 %v1169, %v1169
  %v1234 = vmul.f32 %v1170, %v1170
  %v1235 = vmul.f32 %v1171, %v1171
  %v1236 = vmul.f32 %v1172, %v1172
  %v1237 = vmul.f32 %v1173, %v1173
  %v1238 = vmul.f32 %v1174, %v1174
  %v1239 = vmul.f32 %v1175, %v1175
  %v1240 = vmul.f32 %v1176, %v1176
  %v1241 = vmul.f32 %v1177, %v1177
  %v1242 = vmul.f32 %v1178, %v1178
  %v1243 = vmul.f32 %v1179, %v1179
  %v1244 = vmul.f32 %v1180, %v1180
  %v1245 = vmul.f32 %v1181, %v1181
  %v1246 = vmul.f32 %v1182, %v1182
  %v1247 = vmul.f32 %v1183, %v1183
  %v1248 = vmul.f32 %v1184, %v1184
  %v1249 = vmul.f32 %v1185, %v1185
  %v1250 = vmul.f32 %v1186, %v1186
  %v1251 = vmul.f32 %v1187, %v1187
  %v1252 = vmul.f32 %v1188, %v1188
  %v1253 = vmul.f32 %v1189, %v1189
  %v1254 = vmul.f32 %v1190, %v1190
  %v1255 = vmul.f32 %v1191, %v1191
  %v1256 = vmul.f32 %v1192, %v1192
  %v1257 = vmul.f32 %v1193, %v1193
  %v1258 = vmul.f32 %v1194, %v1194
  %v1259 = vmul.f32 %v1195, %v1195
  %v1260 = vmul.f32 %v1196, %v1196
  %v1261 = vmul.f32 %v1197, %v1197
  %v1262 = vmul.f32 %v1198, %v1198
  %v1263 = vmul.f32 %v1199, %v1199
  %v1264 = vmul.f32 %v1200, %v1200
  %v1265 = vmul.f32 %v1201, %v1201
  %v1266 = vmul.f32 %v1202, %v1202
  %v1267 = vmul.f32 %v1203, %v1203
  %v1268 = vmul.f32 %v1204, %v1204
  %v1269 = vmul.f32 %v1205, %v1205
  %v1270 = vmul.f32 %v1206, %v1206
  %v1271 = vmul.f32 %v1207, %v1207
  %v1272 = vmul.f32 %v1208, %v1208
  %v1273 = vmul.f32 %v1209, %v1209
  %v1274 = vmul.f32 %v1210, %v1210
  %v1275 = vmul.f32 %v1211, %v1211
  %v1276 = vmul.f32 %v1212, %v1212
  %v1277 = vmul.f32 %v1213, %v1213
  %v1278 = vmul.f32 %v1214, %v1214
  %v1279 = vmul.f32 %v1215, %v1215
  %v1280 = vmul.f32 %v1216, %v1216
  %v1281 = vmul.f32 %v1217, %v1217
  %v1282 = vmul.f32 %v1218, %v1218
  %v1283 = vmul.f32 %v1219, %v1219
  %v1284 = vmul.f32 %v1220, %v1220
  %v1285 = vmul.f32 %v1221, %v1221
  %v1286 = vmul.f32 %v1222, %v1222
  %v1287 = vsel %vm895, %v1223, 0.0
  %1288 = vadd.xlane.f32.xlu0 %v1287
  %v1289 = vpop.xlane.xlu0 %1288
  %v1290 = vsel %vm895, %v1224, 0.0
  %1291 = vadd.xlane.f32.xlu0 %v1290
  %v1292 = vpop.xlane.xlu0 %1291
  %v1293 = vsel %vm895, %v1225, 0.0
  %1294 = vadd.xlane.f32.xlu0 %v1293
  %v1295 = vpop.xlane.xlu0 %1294
  %v1296 = vsel %vm895, %v1226, 0.0
  %1297 = vadd.xlane.f32.xlu0 %v1296
  %v1298 = vpop.xlane.xlu0 %1297
  %v1299 = vsel %vm895, %v1227, 0.0
  %1300 = vadd.xlane.f32.xlu0 %v1299
  %v1301 = vpop.xlane.xlu0 %1300
  %v1302 = vsel %vm895, %v1228, 0.0
  %1303 = vadd.xlane.f32.xlu0 %v1302
  %v1304 = vpop.xlane.xlu0 %1303
  %v1305 = vsel %vm895, %v1229, 0.0
  %1306 = vadd.xlane.f32.xlu0 %v1305
  %v1307 = vpop.xlane.xlu0 %1306
  %v1308 = vsel %vm895, %v1230, 0.0
  %1309 = vadd.xlane.f32.xlu0 %v1308
  %v1310 = vpop.xlane.xlu0 %1309
  %v1311 = vsel %vm895, %v1231, 0.0
  %1312 = vadd.xlane.f32.xlu0 %v1311
  %v1313 = vpop.xlane.xlu0 %1312
  %v1314 = vsel %vm895, %v1232, 0.0
  %1315 = vadd.xlane.f32.xlu0 %v1314
  %v1316 = vpop.xlane.xlu0 %1315
  %v1317 = vsel %vm895, %v1233, 0.0
  %1318 = vadd.xlane.f32.xlu0 %v1317
  %v1319 = vpop.xlane.xlu0 %1318
  %v1320 = vsel %vm895, %v1234, 0.0
  %1321 = vadd.xlane.f32.xlu0 %v1320
  %v1322 = vpop.xlane.xlu0 %1321
  %v1323 = vsel %vm895, %v1235, 0.0
  %1324 = vadd.xlane.f32.xlu0 %v1323
  %v1325 = vpop.xlane.xlu0 %1324
  %v1326 = vsel %vm895, %v1236, 0.0
  %1327 = vadd.xlane.f32.xlu0 %v1326
  %v1328 = vpop.xlane.xlu0 %1327
  %v1329 = vsel %vm895, %v1237, 0.0
  %1330 = vadd.xlane.f32.xlu0 %v1329
  %v1331 = vpop.xlane.xlu0 %1330
  %v1332 = vsel %vm895, %v1238, 0.0
  %1333 = vadd.xlane.f32.xlu0 %v1332
  %v1334 = vpop.xlane.xlu0 %1333
  %v1335 = vsel %vm895, %v1239, 0.0
  %1336 = vadd.xlane.f32.xlu0 %v1335
  %v1337 = vpop.xlane.xlu0 %1336
  %v1338 = vsel %vm895, %v1240, 0.0
  %1339 = vadd.xlane.f32.xlu0 %v1338
  %v1340 = vpop.xlane.xlu0 %1339
  %v1341 = vsel %vm895, %v1241, 0.0
  %1342 = vadd.xlane.f32.xlu0 %v1341
  %v1343 = vpop.xlane.xlu0 %1342
  %v1344 = vsel %vm895, %v1242, 0.0
  %1345 = vadd.xlane.f32.xlu0 %v1344
  %v1346 = vpop.xlane.xlu0 %1345
  %v1347 = vsel %vm895, %v1243, 0.0
  %1348 = vadd.xlane.f32.xlu0 %v1347
  %v1349 = vpop.xlane.xlu0 %1348
  %v1350 = vsel %vm895, %v1244, 0.0
  %1351 = vadd.xlane.f32.xlu0 %v1350
  %v1352 = vpop.xlane.xlu0 %1351
  %v1353 = vsel %vm895, %v1245, 0.0
  %1354 = vadd.xlane.f32.xlu0 %v1353
  %v1355 = vpop.xlane.xlu0 %1354
  %v1356 = vsel %vm895, %v1246, 0.0
  %1357 = vadd.xlane.f32.xlu0 %v1356
  %v1358 = vpop.xlane.xlu0 %1357
  %v1359 = vsel %vm895, %v1247, 0.0
  %1360 = vadd.xlane.f32.xlu0 %v1359
  %v1361 = vpop.xlane.xlu0 %1360
  %v1362 = vsel %vm895, %v1248, 0.0
  %1363 = vadd.xlane.f32.xlu0 %v1362
  %v1364 = vpop.xlane.xlu0 %1363
  %v1365 = vsel %vm895, %v1249, 0.0
  %1366 = vadd.xlane.f32.xlu0 %v1365
  %v1367 = vpop.xlane.xlu0 %1366
  %v1368 = vsel %vm895, %v1250, 0.0
  %1369 = vadd.xlane.f32.xlu0 %v1368
  %v1370 = vpop.xlane.xlu0 %1369
  %v1371 = vsel %vm895, %v1251, 0.0
  %1372 = vadd.xlane.f32.xlu0 %v1371
  %v1373 = vpop.xlane.xlu0 %1372
  %v1374 = vsel %vm895, %v1252, 0.0
  %1375 = vadd.xlane.f32.xlu0 %v1374
  %v1376 = vpop.xlane.xlu0 %1375
  %v1377 = vsel %vm895, %v1253, 0.0
  %1378 = vadd.xlane.f32.xlu0 %v1377
  %v1379 = vpop.xlane.xlu0 %1378
  %v1380 = vsel %vm895, %v1254, 0.0
  %1381 = vadd.xlane.f32.xlu0 %v1380
  %v1382 = vpop.xlane.xlu0 %1381
  %v1383 = vsel %vm895, %v1255, 0.0
  %1384 = vadd.xlane.f32.xlu0 %v1383
  %v1385 = vpop.xlane.xlu0 %1384
  %v1386 = vsel %vm895, %v1256, 0.0
  %1387 = vadd.xlane.f32.xlu0 %v1386
  %v1388 = vpop.xlane.xlu0 %1387
  %v1389 = vsel %vm895, %v1257, 0.0
  %1390 = vadd.xlane.f32.xlu0 %v1389
  %v1391 = vpop.xlane.xlu0 %1390
  %v1392 = vsel %vm895, %v1258, 0.0
  %1393 = vadd.xlane.f32.xlu0 %v1392
  %v1394 = vpop.xlane.xlu0 %1393
  %v1395 = vsel %vm895, %v1259, 0.0
  %1396 = vadd.xlane.f32.xlu0 %v1395
  %v1397 = vpop.xlane.xlu0 %1396
  %v1398 = vsel %vm895, %v1260, 0.0
  %1399 = vadd.xlane.f32.xlu0 %v1398
  %v1400 = vpop.xlane.xlu0 %1399
  %v1401 = vsel %vm895, %v1261, 0.0
  %1402 = vadd.xlane.f32.xlu0 %v1401
  %v1403 = vpop.xlane.xlu0 %1402
  %v1404 = vsel %vm895, %v1262, 0.0
  %1405 = vadd.xlane.f32.xlu0 %v1404
  %v1406 = vpop.xlane.xlu0 %1405
  %v1407 = vsel %vm895, %v1263, 0.0
  %1408 = vadd.xlane.f32.xlu0 %v1407
  %v1409 = vpop.xlane.xlu0 %1408
  %v1410 = vsel %vm895, %v1264, 0.0
  %1411 = vadd.xlane.f32.xlu0 %v1410
  %v1412 = vpop.xlane.xlu0 %1411
  %v1413 = vsel %vm895, %v1265, 0.0
  %1414 = vadd.xlane.f32.xlu0 %v1413
  %v1415 = vpop.xlane.xlu0 %1414
  %v1416 = vsel %vm895, %v1266, 0.0
  %1417 = vadd.xlane.f32.xlu0 %v1416
  %v1418 = vpop.xlane.xlu0 %1417
  %v1419 = vsel %vm895, %v1267, 0.0
  %1420 = vadd.xlane.f32.xlu0 %v1419
  %v1421 = vpop.xlane.xlu0 %1420
  %v1422 = vsel %vm895, %v1268, 0.0
  %1423 = vadd.xlane.f32.xlu0 %v1422
  %v1424 = vpop.xlane.xlu0 %1423
  %v1425 = vsel %vm895, %v1269, 0.0
  %1426 = vadd.xlane.f32.xlu0 %v1425
  %v1427 = vpop.xlane.xlu0 %1426
  %v1428 = vsel %vm895, %v1270, 0.0
  %1429 = vadd.xlane.f32.xlu0 %v1428
  %v1430 = vpop.xlane.xlu0 %1429
  %v1431 = vsel %vm895, %v1271, 0.0
  %1432 = vadd.xlane.f32.xlu0 %v1431
  %v1433 = vpop.xlane.xlu0 %1432
  %v1434 = vsel %vm895, %v1272, 0.0
  %1435 = vadd.xlane.f32.xlu0 %v1434
  %v1436 = vpop.xlane.xlu0 %1435
  %v1437 = vsel %vm895, %v1273, 0.0
  %1438 = vadd.xlane.f32.xlu0 %v1437
  %v1439 = vpop.xlane.xlu0 %1438
  %v1440 = vsel %vm895, %v1274, 0.0
  %1441 = vadd.xlane.f32.xlu0 %v1440
  %v1442 = vpop.xlane.xlu0 %1441
  %v1443 = vsel %vm895, %v1275, 0.0
  %1444 = vadd.xlane.f32.xlu0 %v1443
  %v1445 = vpop.xlane.xlu0 %1444
  %v1446 = vsel %vm895, %v1276, 0.0
  %1447 = vadd.xlane.f32.xlu0 %v1446
  %v1448 = vpop.xlane.xlu0 %1447
  %v1449 = vsel %vm895, %v1277, 0.0
  %1450 = vadd.xlane.f32.xlu0 %v1449
  %v1451 = vpop.xlane.xlu0 %1450
  %v1452 = vsel %vm895, %v1278, 0.0
  %1453 = vadd.xlane.f32.xlu0 %v1452
  %v1454 = vpop.xlane.xlu0 %1453
  %v1455 = vsel %vm895, %v1279, 0.0
  %1456 = vadd.xlane.f32.xlu0 %v1455
  %v1457 = vpop.xlane.xlu0 %1456
  %v1458 = vsel %vm895, %v1280, 0.0
  %1459 = vadd.xlane.f32.xlu0 %v1458
  %v1460 = vpop.xlane.xlu0 %1459
  %v1461 = vsel %vm895, %v1281, 0.0
  %1462 = vadd.xlane.f32.xlu0 %v1461
  %v1463 = vpop.xlane.xlu0 %1462
  %v1464 = vsel %vm895, %v1282, 0.0
  %1465 = vadd.xlane.f32.xlu0 %v1464
  %v1466 = vpop.xlane.xlu0 %1465
  %v1467 = vsel %vm895, %v1283, 0.0
  %1468 = vadd.xlane.f32.xlu0 %v1467
  %v1469 = vpop.xlane.xlu0 %1468
  %v1470 = vsel %vm895, %v1284, 0.0
  %1471 = vadd.xlane.f32.xlu0 %v1470
  %v1472 = vpop.xlane.xlu0 %1471
  %v1473 = vsel %vm895, %v1285, 0.0
  %1474 = vadd.xlane.f32.xlu0 %v1473
  %v1475 = vpop.xlane.xlu0 %1474
  %v1476 = vsel %vm895, %v1286, 0.0
  %1477 = vadd.xlane.f32.xlu0 %v1476
  %v1478 = vpop.xlane.xlu0 %1477
  %v1479 = vmul.f32 %v1289, %v1094
  %v1480 = vmul.f32 %v1292, %v1094
  %v1481 = vmul.f32 %v1295, %v1094
  %v1482 = vmul.f32 %v1298, %v1094
  %v1483 = vmul.f32 %v1301, %v1094
  %v1484 = vmul.f32 %v1304, %v1094
  %v1485 = vmul.f32 %v1307, %v1094
  %v1486 = vmul.f32 %v1310, %v1094
  %v1487 = vmul.f32 %v1313, %v1094
  %v1488 = vmul.f32 %v1316, %v1094
  %v1489 = vmul.f32 %v1319, %v1094
  %v1490 = vmul.f32 %v1322, %v1094
  %v1491 = vmul.f32 %v1325, %v1094
  %v1492 = vmul.f32 %v1328, %v1094
  %v1493 = vmul.f32 %v1331, %v1094
  %v1494 = vmul.f32 %v1334, %v1094
  %v1495 = vmul.f32 %v1337, %v1094
  %v1496 = vmul.f32 %v1340, %v1094
  %v1497 = vmul.f32 %v1343, %v1094
  %v1498 = vmul.f32 %v1346, %v1094
  %v1499 = vmul.f32 %v1349, %v1094
  %v1500 = vmul.f32 %v1352, %v1094
  %v1501 = vmul.f32 %v1355, %v1094
  %v1502 = vmul.f32 %v1358, %v1094
  %v1503 = vmul.f32 %v1361, %v1094
  %v1504 = vmul.f32 %v1364, %v1094
  %v1505 = vmul.f32 %v1367, %v1094
  %v1506 = vmul.f32 %v1370, %v1094
  %v1507 = vmul.f32 %v1373, %v1094
  %v1508 = vmul.f32 %v1376, %v1094
  %v1509 = vmul.f32 %v1379, %v1094
  %v1510 = vmul.f32 %v1382, %v1094
  %v1511 = vmul.f32 %v1385, %v1094
  %v1512 = vmul.f32 %v1388, %v1094
  %v1513 = vmul.f32 %v1391, %v1094
  %v1514 = vmul.f32 %v1394, %v1094
  %v1515 = vmul.f32 %v1397, %v1094
  %v1516 = vmul.f32 %v1400, %v1094
  %v1517 = vmul.f32 %v1403, %v1094
  %v1518 = vmul.f32 %v1406, %v1094
  %v1519 = vmul.f32 %v1409, %v1094
  %v1520 = vmul.f32 %v1412, %v1094
  %v1521 = vmul.f32 %v1415, %v1094
  %v1522 = vmul.f32 %v1418, %v1094
  %v1523 = vmul.f32 %v1421, %v1094
  %v1524 = vmul.f32 %v1424, %v1094
  %v1525 = vmul.f32 %v1427, %v1094
  %v1526 = vmul.f32 %v1430, %v1094
  %v1527 = vmul.f32 %v1433, %v1094
  %v1528 = vmul.f32 %v1436, %v1094
  %v1529 = vmul.f32 %v1439, %v1094
  %v1530 = vmul.f32 %v1442, %v1094
  %v1531 = vmul.f32 %v1445, %v1094
  %v1532 = vmul.f32 %v1448, %v1094
  %v1533 = vmul.f32 %v1451, %v1094
  %v1534 = vmul.f32 %v1454, %v1094
  %v1535 = vmul.f32 %v1457, %v1094
  %v1536 = vmul.f32 %v1460, %v1094
  %v1537 = vmul.f32 %v1463, %v1094
  %v1538 = vmul.f32 %v1466, %v1094
  %v1539 = vmul.f32 %v1469, %v1094
  %v1540 = vmul.f32 %v1472, %v1094
  %v1541 = vmul.f32 %v1475, %v1094
  %v1542 = vmul.f32 %v1478, %v1094
  %v1543 = vadd.f32 %v1479, 1e-05
  %v1544 = vadd.f32 %v1480, 1e-05
  %v1545 = vadd.f32 %v1481, 1e-05
  %v1546 = vadd.f32 %v1482, 1e-05
  %v1547 = vadd.f32 %v1483, 1e-05
  %v1548 = vadd.f32 %v1484, 1e-05
  %v1549 = vadd.f32 %v1485, 1e-05
  %v1550 = vadd.f32 %v1486, 1e-05
  %v1551 = vadd.f32 %v1487, 1e-05
  %v1552 = vadd.f32 %v1488, 1e-05
  %v1553 = vadd.f32 %v1489, 1e-05
  %v1554 = vadd.f32 %v1490, 1e-05
  %v1555 = vadd.f32 %v1491, 1e-05
  %v1556 = vadd.f32 %v1492, 1e-05
  %v1557 = vadd.f32 %v1493, 1e-05
  %v1558 = vadd.f32 %v1494, 1e-05
  %v1559 = vadd.f32 %v1495, 1e-05
  %v1560 = vadd.f32 %v1496, 1e-05
  %v1561 = vadd.f32 %v1497, 1e-05
  %v1562 = vadd.f32 %v1498, 1e-05
  %v1563 = vadd.f32 %v1499, 1e-05
  %v1564 = vadd.f32 %v1500, 1e-05
  %v1565 = vadd.f32 %v1501, 1e-05
  %v1566 = vadd.f32 %v1502, 1e-05
  %v1567 = vadd.f32 %v1503, 1e-05
  %v1568 = vadd.f32 %v1504, 1e-05
  %v1569 = vadd.f32 %v1505, 1e-05
  %v1570 = vadd.f32 %v1506, 1e-05
  %v1571 = vadd.f32 %v1507, 1e-05
  %v1572 = vadd.f32 %v1508, 1e-05
  %v1573 = vadd.f32 %v1509, 1e-05
  %v1574 = vadd.f32 %v1510, 1e-05
  %v1575 = vadd.f32 %v1511, 1e-05
  %v1576 = vadd.f32 %v1512, 1e-05
  %v1577 = vadd.f32 %v1513, 1e-05
  %v1578 = vadd.f32 %v1514, 1e-05
  %v1579 = vadd.f32 %v1515, 1e-05
  %v1580 = vadd.f32 %v1516, 1e-05
  %v1581 = vadd.f32 %v1517, 1e-05
  %v1582 = vadd.f32 %v1518, 1e-05
  %v1583 = vadd.f32 %v1519, 1e-05
  %v1584 = vadd.f32 %v1520, 1e-05
  %v1585 = vadd.f32 %v1521, 1e-05
  %v1586 = vadd.f32 %v1522, 1e-05
  %v1587 = vadd.f32 %v1523, 1e-05
  %v1588 = vadd.f32 %v1524, 1e-05
  %v1589 = vadd.f32 %v1525, 1e-05
  %v1590 = vadd.f32 %v1526, 1e-05
  %v1591 = vadd.f32 %v1527, 1e-05
  %v1592 = vadd.f32 %v1528, 1e-05
  %v1593 = vadd.f32 %v1529, 1e-05
  %v1594 = vadd.f32 %v1530, 1e-05
  %v1595 = vadd.f32 %v1531, 1e-05
  %v1596 = vadd.f32 %v1532, 1e-05
  %v1597 = vadd.f32 %v1533, 1e-05
  %v1598 = vadd.f32 %v1534, 1e-05
  %v1599 = vadd.f32 %v1535, 1e-05
  %v1600 = vadd.f32 %v1536, 1e-05
  %v1601 = vadd.f32 %v1537, 1e-05
  %v1602 = vadd.f32 %v1538, 1e-05
  %v1603 = vadd.f32 %v1539, 1e-05
  %v1604 = vadd.f32 %v1540, 1e-05
  %v1605 = vadd.f32 %v1541, 1e-05
  %v1606 = vadd.f32 %v1542, 1e-05
  %v1607 = vrsqrt.pop %v1543
  %v1608 = vmul.f32 %v1607, %v1543
  %v1609 = vmul.f32 %v1608, %v1607
  %v1610 = vmul.f32 0.5, %v1609
  %v1611 = vsub.f32 1.5, %v1610
  %v1612 = vmul.f32 %v1607, %v1611
  %vm1613 = vweird.f32 %v1543
  %vm1614 = vweird.f32 %v1607
  %vm1615 = vmor %vm1613, %vm1614
  %v1616 = vsel %vm1615, %v1607, %v1612
  %v1617 = vrsqrt.pop %v1544
  %v1618 = vmul.f32 %v1617, %v1544
  %v1619 = vmul.f32 %v1618, %v1617
  %v1620 = vmul.f32 0.5, %v1619
  %v1621 = vsub.f32 1.5, %v1620
  %v1622 = vmul.f32 %v1617, %v1621
  %vm1623 = vweird.f32 %v1544
  %vm1624 = vweird.f32 %v1617
  %vm1625 = vmor %vm1623, %vm1624
  %v1626 = vsel %vm1625, %v1617, %v1622
  %v1627 = vrsqrt.pop %v1545
  %v1628 = vmul.f32 %v1627, %v1545
  %v1629 = vmul.f32 %v1628, %v1627
  %v1630 = vmul.f32 0.5, %v1629
  %v1631 = vsub.f32 1.5, %v1630
  %v1632 = vmul.f32 %v1627, %v1631
  %vm1633 = vweird.f32 %v1545
  %vm1634 = vweird.f32 %v1627
  %vm1635 = vmor %vm1633, %vm1634
  %v1636 = vsel %vm1635, %v1627, %v1632
  %v1637 = vrsqrt.pop %v1546
  %v1638 = vmul.f32 %v1637, %v1546
  %v1639 = vmul.f32 %v1638, %v1637
  %v1640 = vmul.f32 0.5, %v1639
  %v1641 = vsub.f32 1.5, %v1640
  %v1642 = vmul.f32 %v1637, %v1641
  %vm1643 = vweird.f32 %v1546
  %vm1644 = vweird.f32 %v1637
  %vm1645 = vmor %vm1643, %vm1644
  %v1646 = vsel %vm1645, %v1637, %v1642
  %v1647 = vrsqrt.pop %v1547
  %v1648 = vmul.f32 %v1647, %v1547
  %v1649 = vmul.f32 %v1648, %v1647
  %v1650 = vmul.f32 0.5, %v1649
  %v1651 = vsub.f32 1.5, %v1650
  %v1652 = vmul.f32 %v1647, %v1651
  %vm1653 = vweird.f32 %v1547
  %vm1654 = vweird.f32 %v1647
  %vm1655 = vmor %vm1653, %vm1654
  %v1656 = vsel %vm1655, %v1647, %v1652
  %v1657 = vrsqrt.pop %v1548
  %v1658 = vmul.f32 %v1657, %v1548
  %v1659 = vmul.f32 %v1658, %v1657
  %v1660 = vmul.f32 0.5, %v1659
  %v1661 = vsub.f32 1.5, %v1660
  %v1662 = vmul.f32 %v1657, %v1661
  %vm1663 = vweird.f32 %v1548
  %vm1664 = vweird.f32 %v1657
  %vm1665 = vmor %vm1663, %vm1664
  %v1666 = vsel %vm1665, %v1657, %v1662
  %v1667 = vrsqrt.pop %v1549
  %v1668 = vmul.f32 %v1667, %v1549
  %v1669 = vmul.f32 %v1668, %v1667
  %v1670 = vmul.f32 0.5, %v1669
  %v1671 = vsub.f32 1.5, %v1670
  %v1672 = vmul.f32 %v1667, %v1671
  %vm1673 = vweird.f32 %v1549
  %vm1674 = vweird.f32 %v1667
  %vm1675 = vmor %vm1673, %vm1674
  %v1676 = vsel %vm1675, %v1667, %v1672
  %v1677 = vrsqrt.pop %v1550
  %v1678 = vmul.f32 %v1677, %v1550
  %v1679 = vmul.f32 %v1678, %v1677
  %v1680 = vmul.f32 0.5, %v1679
  %v1681 = vsub.f32 1.5, %v1680
  %v1682 = vmul.f32 %v1677, %v1681
  %vm1683 = vweird.f32 %v1550
  %vm1684 = vweird.f32 %v1677
  %vm1685 = vmor %vm1683, %vm1684
  %v1686 = vsel %vm1685, %v1677, %v1682
  %v1687 = vrsqrt.pop %v1551
  %v1688 = vmul.f32 %v1687, %v1551
  %v1689 = vmul.f32 %v1688, %v1687
  %v1690 = vmul.f32 0.5, %v1689
  %v1691 = vsub.f32 1.5, %v1690
  %v1692 = vmul.f32 %v1687, %v1691
  %vm1693 = vweird.f32 %v1551
  %vm1694 = vweird.f32 %v1687
  %vm1695 = vmor %vm1693, %vm1694
  %v1696 = vsel %vm1695, %v1687, %v1692
  %v1697 = vrsqrt.pop %v1552
  %v1698 = vmul.f32 %v1697, %v1552
  %v1699 = vmul.f32 %v1698, %v1697
  %v1700 = vmul.f32 0.5, %v1699
  %v1701 = vsub.f32 1.5, %v1700
  %v1702 = vmul.f32 %v1697, %v1701
  %vm1703 = vweird.f32 %v1552
  %vm1704 = vweird.f32 %v1697
  %vm1705 = vmor %vm1703, %vm1704
  %v1706 = vsel %vm1705, %v1697, %v1702
  %v1707 = vrsqrt.pop %v1553
  %v1708 = vmul.f32 %v1707, %v1553
  %v1709 = vmul.f32 %v1708, %v1707
  %v1710 = vmul.f32 0.5, %v1709
  %v1711 = vsub.f32 1.5, %v1710
  %v1712 = vmul.f32 %v1707, %v1711
  %vm1713 = vweird.f32 %v1553
  %vm1714 = vweird.f32 %v1707
  %vm1715 = vmor %vm1713, %vm1714
  %v1716 = vsel %vm1715, %v1707, %v1712
  %v1717 = vrsqrt.pop %v1554
  %v1718 = vmul.f32 %v1717, %v1554
  %v1719 = vmul.f32 %v1718, %v1717
  %v1720 = vmul.f32 0.5, %v1719
  %v1721 = vsub.f32 1.5, %v1720
  %v1722 = vmul.f32 %v1717, %v1721
  %vm1723 = vweird.f32 %v1554
  %vm1724 = vweird.f32 %v1717
  %vm1725 = vmor %vm1723, %vm1724
  %v1726 = vsel %vm1725, %v1717, %v1722
  %v1727 = vrsqrt.pop %v1555
  %v1728 = vmul.f32 %v1727, %v1555
  %v1729 = vmul.f32 %v1728, %v1727
  %v1730 = vmul.f32 0.5, %v1729
  %v1731 = vsub.f32 1.5, %v1730
  %v1732 = vmul.f32 %v1727, %v1731
  %vm1733 = vweird.f32 %v1555
  %vm1734 = vweird.f32 %v1727
  %vm1735 = vmor %vm1733, %vm1734
  %v1736 = vsel %vm1735, %v1727, %v1732
  %v1737 = vrsqrt.pop %v1556
  %v1738 = vmul.f32 %v1737, %v1556
  %v1739 = vmul.f32 %v1738, %v1737
  %v1740 = vmul.f32 0.5, %v1739
  %v1741 = vsub.f32 1.5, %v1740
  %v1742 = vmul.f32 %v1737, %v1741
  %vm1743 = vweird.f32 %v1556
  %vm1744 = vweird.f32 %v1737
  %vm1745 = vmor %vm1743, %vm1744
  %v1746 = vsel %vm1745, %v1737, %v1742
  %v1747 = vrsqrt.pop %v1557
  %v1748 = vmul.f32 %v1747, %v1557
  %v1749 = vmul.f32 %v1748, %v1747
  %v1750 = vmul.f32 0.5, %v1749
  %v1751 = vsub.f32 1.5, %v1750
  %v1752 = vmul.f32 %v1747, %v1751
  %vm1753 = vweird.f32 %v1557
  %vm1754 = vweird.f32 %v1747
  %vm1755 = vmor %vm1753, %vm1754
  %v1756 = vsel %vm1755, %v1747, %v1752
  %v1757 = vrsqrt.pop %v1558
  %v1758 = vmul.f32 %v1757, %v1558
  %v1759 = vmul.f32 %v1758, %v1757
  %v1760 = vmul.f32 0.5, %v1759
  %v1761 = vsub.f32 1.5, %v1760
  %v1762 = vmul.f32 %v1757, %v1761
  %vm1763 = vweird.f32 %v1558
  %vm1764 = vweird.f32 %v1757
  %vm1765 = vmor %vm1763, %vm1764
  %v1766 = vsel %vm1765, %v1757, %v1762
  %v1767 = vrsqrt.pop %v1559
  %v1768 = vmul.f32 %v1767, %v1559
  %v1769 = vmul.f32 %v1768, %v1767
  %v1770 = vmul.f32 0.5, %v1769
  %v1771 = vsub.f32 1.5, %v1770
  %v1772 = vmul.f32 %v1767, %v1771
  %vm1773 = vweird.f32 %v1559
  %vm1774 = vweird.f32 %v1767
  %vm1775 = vmor %vm1773, %vm1774
  %v1776 = vsel %vm1775, %v1767, %v1772
  %v1777 = vrsqrt.pop %v1560
  %v1778 = vmul.f32 %v1777, %v1560
  %v1779 = vmul.f32 %v1778, %v1777
  %v1780 = vmul.f32 0.5, %v1779
  %v1781 = vsub.f32 1.5, %v1780
  %v1782 = vmul.f32 %v1777, %v1781
  %vm1783 = vweird.f32 %v1560
  %vm1784 = vweird.f32 %v1777
  %vm1785 = vmor %vm1783, %vm1784
  %v1786 = vsel %vm1785, %v1777, %v1782
  %v1787 = vrsqrt.pop %v1561
  %v1788 = vmul.f32 %v1787, %v1561
  %v1789 = vmul.f32 %v1788, %v1787
  %v1790 = vmul.f32 0.5, %v1789
  %v1791 = vsub.f32 1.5, %v1790
  %v1792 = vmul.f32 %v1787, %v1791
  %vm1793 = vweird.f32 %v1561
  %vm1794 = vweird.f32 %v1787
  %vm1795 = vmor %vm1793, %vm1794
  %v1796 = vsel %vm1795, %v1787, %v1792
  %v1797 = vrsqrt.pop %v1562
  %v1798 = vmul.f32 %v1797, %v1562
  %v1799 = vmul.f32 %v1798, %v1797
  %v1800 = vmul.f32 0.5, %v1799
  %v1801 = vsub.f32 1.5, %v1800
  %v1802 = vmul.f32 %v1797, %v1801
  %vm1803 = vweird.f32 %v1562
  %vm1804 = vweird.f32 %v1797
  %vm1805 = vmor %vm1803, %vm1804
  %v1806 = vsel %vm1805, %v1797, %v1802
  %v1807 = vrsqrt.pop %v1563
  %v1808 = vmul.f32 %v1807, %v1563
  %v1809 = vmul.f32 %v1808, %v1807
  %v1810 = vmul.f32 0.5, %v1809
  %v1811 = vsub.f32 1.5, %v1810
  %v1812 = vmul.f32 %v1807, %v1811
  %vm1813 = vweird.f32 %v1563
  %vm1814 = vweird.f32 %v1807
  %vm1815 = vmor %vm1813, %vm1814
  %v1816 = vsel %vm1815, %v1807, %v1812
  %v1817 = vrsqrt.pop %v1564
  %v1818 = vmul.f32 %v1817, %v1564
  %v1819 = vmul.f32 %v1818, %v1817
  %v1820 = vmul.f32 0.5, %v1819
  %v1821 = vsub.f32 1.5, %v1820
  %v1822 = vmul.f32 %v1817, %v1821
  %vm1823 = vweird.f32 %v1564
  %vm1824 = vweird.f32 %v1817
  %vm1825 = vmor %vm1823, %vm1824
  %v1826 = vsel %vm1825, %v1817, %v1822
  %v1827 = vrsqrt.pop %v1565
  %v1828 = vmul.f32 %v1827, %v1565
  %v1829 = vmul.f32 %v1828, %v1827
  %v1830 = vmul.f32 0.5, %v1829
  %v1831 = vsub.f32 1.5, %v1830
  %v1832 = vmul.f32 %v1827, %v1831
  %vm1833 = vweird.f32 %v1565
  %vm1834 = vweird.f32 %v1827
  %vm1835 = vmor %vm1833, %vm1834
  %v1836 = vsel %vm1835, %v1827, %v1832
  %v1837 = vrsqrt.pop %v1566
  %v1838 = vmul.f32 %v1837, %v1566
  %v1839 = vmul.f32 %v1838, %v1837
  %v1840 = vmul.f32 0.5, %v1839
  %v1841 = vsub.f32 1.5, %v1840
  %v1842 = vmul.f32 %v1837, %v1841
  %vm1843 = vweird.f32 %v1566
  %vm1844 = vweird.f32 %v1837
  %vm1845 = vmor %vm1843, %vm1844
  %v1846 = vsel %vm1845, %v1837, %v1842
  %v1847 = vrsqrt.pop %v1567
  %v1848 = vmul.f32 %v1847, %v1567
  %v1849 = vmul.f32 %v1848, %v1847
  %v1850 = vmul.f32 0.5, %v1849
  %v1851 = vsub.f32 1.5, %v1850
  %v1852 = vmul.f32 %v1847, %v1851
  %vm1853 = vweird.f32 %v1567
  %vm1854 = vweird.f32 %v1847
  %vm1855 = vmor %vm1853, %vm1854
  %v1856 = vsel %vm1855, %v1847, %v1852
  %v1857 = vrsqrt.pop %v1568
  %v1858 = vmul.f32 %v1857, %v1568
  %v1859 = vmul.f32 %v1858, %v1857
  %v1860 = vmul.f32 0.5, %v1859
  %v1861 = vsub.f32 1.5, %v1860
  %v1862 = vmul.f32 %v1857, %v1861
  %vm1863 = vweird.f32 %v1568
  %vm1864 = vweird.f32 %v1857
  %vm1865 = vmor %vm1863, %vm1864
  %v1866 = vsel %vm1865, %v1857, %v1862
  %v1867 = vrsqrt.pop %v1569
  %v1868 = vmul.f32 %v1867, %v1569
  %v1869 = vmul.f32 %v1868, %v1867
  %v1870 = vmul.f32 0.5, %v1869
  %v1871 = vsub.f32 1.5, %v1870
  %v1872 = vmul.f32 %v1867, %v1871
  %vm1873 = vweird.f32 %v1569
  %vm1874 = vweird.f32 %v1867
  %vm1875 = vmor %vm1873, %vm1874
  %v1876 = vsel %vm1875, %v1867, %v1872
  %v1877 = vrsqrt.pop %v1570
  %v1878 = vmul.f32 %v1877, %v1570
  %v1879 = vmul.f32 %v1878, %v1877
  %v1880 = vmul.f32 0.5, %v1879
  %v1881 = vsub.f32 1.5, %v1880
  %v1882 = vmul.f32 %v1877, %v1881
  %vm1883 = vweird.f32 %v1570
  %vm1884 = vweird.f32 %v1877
  %vm1885 = vmor %vm1883, %vm1884
  %v1886 = vsel %vm1885, %v1877, %v1882
  %v1887 = vrsqrt.pop %v1571
  %v1888 = vmul.f32 %v1887, %v1571
  %v1889 = vmul.f32 %v1888, %v1887
  %v1890 = vmul.f32 0.5, %v1889
  %v1891 = vsub.f32 1.5, %v1890
  %v1892 = vmul.f32 %v1887, %v1891
  %vm1893 = vweird.f32 %v1571
  %vm1894 = vweird.f32 %v1887
  %vm1895 = vmor %vm1893, %vm1894
  %v1896 = vsel %vm1895, %v1887, %v1892
  %v1897 = vrsqrt.pop %v1572
  %v1898 = vmul.f32 %v1897, %v1572
  %v1899 = vmul.f32 %v1898, %v1897
  %v1900 = vmul.f32 0.5, %v1899
  %v1901 = vsub.f32 1.5, %v1900
  %v1902 = vmul.f32 %v1897, %v1901
  %vm1903 = vweird.f32 %v1572
  %vm1904 = vweird.f32 %v1897
  %vm1905 = vmor %vm1903, %vm1904
  %v1906 = vsel %vm1905, %v1897, %v1902
  %v1907 = vrsqrt.pop %v1573
  %v1908 = vmul.f32 %v1907, %v1573
  %v1909 = vmul.f32 %v1908, %v1907
  %v1910 = vmul.f32 0.5, %v1909
  %v1911 = vsub.f32 1.5, %v1910
  %v1912 = vmul.f32 %v1907, %v1911
  %vm1913 = vweird.f32 %v1573
  %vm1914 = vweird.f32 %v1907
  %vm1915 = vmor %vm1913, %vm1914
  %v1916 = vsel %vm1915, %v1907, %v1912
  %v1917 = vrsqrt.pop %v1574
  %v1918 = vmul.f32 %v1917, %v1574
  %v1919 = vmul.f32 %v1918, %v1917
  %v1920 = vmul.f32 0.5, %v1919
  %v1921 = vsub.f32 1.5, %v1920
  %v1922 = vmul.f32 %v1917, %v1921
  %vm1923 = vweird.f32 %v1574
  %vm1924 = vweird.f32 %v1917
  %vm1925 = vmor %vm1923, %vm1924
  %v1926 = vsel %vm1925, %v1917, %v1922
  %v1927 = vrsqrt.pop %v1575
  %v1928 = vmul.f32 %v1927, %v1575
  %v1929 = vmul.f32 %v1928, %v1927
  %v1930 = vmul.f32 0.5, %v1929
  %v1931 = vsub.f32 1.5, %v1930
  %v1932 = vmul.f32 %v1927, %v1931
  %vm1933 = vweird.f32 %v1575
  %vm1934 = vweird.f32 %v1927
  %vm1935 = vmor %vm1933, %vm1934
  %v1936 = vsel %vm1935, %v1927, %v1932
  %v1937 = vrsqrt.pop %v1576
  %v1938 = vmul.f32 %v1937, %v1576
  %v1939 = vmul.f32 %v1938, %v1937
  %v1940 = vmul.f32 0.5, %v1939
  %v1941 = vsub.f32 1.5, %v1940
  %v1942 = vmul.f32 %v1937, %v1941
  %vm1943 = vweird.f32 %v1576
  %vm1944 = vweird.f32 %v1937
  %vm1945 = vmor %vm1943, %vm1944
  %v1946 = vsel %vm1945, %v1937, %v1942
  %v1947 = vrsqrt.pop %v1577
  %v1948 = vmul.f32 %v1947, %v1577
  %v1949 = vmul.f32 %v1948, %v1947
  %v1950 = vmul.f32 0.5, %v1949
  %v1951 = vsub.f32 1.5, %v1950
  %v1952 = vmul.f32 %v1947, %v1951
  %vm1953 = vweird.f32 %v1577
  %vm1954 = vweird.f32 %v1947
  %vm1955 = vmor %vm1953, %vm1954
  %v1956 = vsel %vm1955, %v1947, %v1952
  %v1957 = vrsqrt.pop %v1578
  %v1958 = vmul.f32 %v1957, %v1578
  %v1959 = vmul.f32 %v1958, %v1957
  %v1960 = vmul.f32 0.5, %v1959
  %v1961 = vsub.f32 1.5, %v1960
  %v1962 = vmul.f32 %v1957, %v1961
  %vm1963 = vweird.f32 %v1578
  %vm1964 = vweird.f32 %v1957
  %vm1965 = vmor %vm1963, %vm1964
  %v1966 = vsel %vm1965, %v1957, %v1962
  %v1967 = vrsqrt.pop %v1579
  %v1968 = vmul.f32 %v1967, %v1579
  %v1969 = vmul.f32 %v1968, %v1967
  %v1970 = vmul.f32 0.5, %v1969
  %v1971 = vsub.f32 1.5, %v1970
  %v1972 = vmul.f32 %v1967, %v1971
  %vm1973 = vweird.f32 %v1579
  %vm1974 = vweird.f32 %v1967
  %vm1975 = vmor %vm1973, %vm1974
  %v1976 = vsel %vm1975, %v1967, %v1972
  %v1977 = vrsqrt.pop %v1580
  %v1978 = vmul.f32 %v1977, %v1580
  %v1979 = vmul.f32 %v1978, %v1977
  %v1980 = vmul.f32 0.5, %v1979
  %v1981 = vsub.f32 1.5, %v1980
  %v1982 = vmul.f32 %v1977, %v1981
  %vm1983 = vweird.f32 %v1580
  %vm1984 = vweird.f32 %v1977
  %vm1985 = vmor %vm1983, %vm1984
  %v1986 = vsel %vm1985, %v1977, %v1982
  %v1987 = vrsqrt.pop %v1581
  %v1988 = vmul.f32 %v1987, %v1581
  %v1989 = vmul.f32 %v1988, %v1987
  %v1990 = vmul.f32 0.5, %v1989
  %v1991 = vsub.f32 1.5, %v1990
  %v1992 = vmul.f32 %v1987, %v1991
  %vm1993 = vweird.f32 %v1581
  %vm1994 = vweird.f32 %v1987
  %vm1995 = vmor %vm1993, %vm1994
  %v1996 = vsel %vm1995, %v1987, %v1992
  %v1997 = vrsqrt.pop %v1582
  %v1998 = vmul.f32 %v1997, %v1582
  %v1999 = vmul.f32 %v1998, %v1997
  %v2000 = vmul.f32 0.5, %v1999
  %v2001 = vsub.f32 1.5, %v2000
  %v2002 = vmul.f32 %v1997, %v2001
  %vm2003 = vweird.f32 %v1582
  %vm2004 = vweird.f32 %v1997
  %vm2005 = vmor %vm2003, %vm2004
  %v2006 = vsel %vm2005, %v1997, %v2002
  %v2007 = vrsqrt.pop %v1583
  %v2008 = vmul.f32 %v2007, %v1583
  %v2009 = vmul.f32 %v2008, %v2007
  %v2010 = vmul.f32 0.5, %v2009
  %v2011 = vsub.f32 1.5, %v2010
  %v2012 = vmul.f32 %v2007, %v2011
  %vm2013 = vweird.f32 %v1583
  %vm2014 = vweird.f32 %v2007
  %vm2015 = vmor %vm2013, %vm2014
  %v2016 = vsel %vm2015, %v2007, %v2012
  %v2017 = vrsqrt.pop %v1584
  %v2018 = vmul.f32 %v2017, %v1584
  %v2019 = vmul.f32 %v2018, %v2017
  %v2020 = vmul.f32 0.5, %v2019
  %v2021 = vsub.f32 1.5, %v2020
  %v2022 = vmul.f32 %v2017, %v2021
  %vm2023 = vweird.f32 %v1584
  %vm2024 = vweird.f32 %v2017
  %vm2025 = vmor %vm2023, %vm2024
  %v2026 = vsel %vm2025, %v2017, %v2022
  %v2027 = vrsqrt.pop %v1585
  %v2028 = vmul.f32 %v2027, %v1585
  %v2029 = vmul.f32 %v2028, %v2027
  %v2030 = vmul.f32 0.5, %v2029
  %v2031 = vsub.f32 1.5, %v2030
  %v2032 = vmul.f32 %v2027, %v2031
  %vm2033 = vweird.f32 %v1585
  %vm2034 = vweird.f32 %v2027
  %vm2035 = vmor %vm2033, %vm2034
  %v2036 = vsel %vm2035, %v2027, %v2032
  %v2037 = vrsqrt.pop %v1586
  %v2038 = vmul.f32 %v2037, %v1586
  %v2039 = vmul.f32 %v2038, %v2037
  %v2040 = vmul.f32 0.5, %v2039
  %v2041 = vsub.f32 1.5, %v2040
  %v2042 = vmul.f32 %v2037, %v2041
  %vm2043 = vweird.f32 %v1586
  %vm2044 = vweird.f32 %v2037
  %vm2045 = vmor %vm2043, %vm2044
  %v2046 = vsel %vm2045, %v2037, %v2042
  %v2047 = vrsqrt.pop %v1587
  %v2048 = vmul.f32 %v2047, %v1587
  %v2049 = vmul.f32 %v2048, %v2047
  %v2050 = vmul.f32 0.5, %v2049
  %v2051 = vsub.f32 1.5, %v2050
  %v2052 = vmul.f32 %v2047, %v2051
  %vm2053 = vweird.f32 %v1587
  %vm2054 = vweird.f32 %v2047
  %vm2055 = vmor %vm2053, %vm2054
  %v2056 = vsel %vm2055, %v2047, %v2052
  %v2057 = vrsqrt.pop %v1588
  %v2058 = vmul.f32 %v2057, %v1588
  %v2059 = vmul.f32 %v2058, %v2057
  %v2060 = vmul.f32 0.5, %v2059
  %v2061 = vsub.f32 1.5, %v2060
  %v2062 = vmul.f32 %v2057, %v2061
  %vm2063 = vweird.f32 %v1588
  %vm2064 = vweird.f32 %v2057
  %vm2065 = vmor %vm2063, %vm2064
  %v2066 = vsel %vm2065, %v2057, %v2062
  %v2067 = vrsqrt.pop %v1589
  %v2068 = vmul.f32 %v2067, %v1589
  %v2069 = vmul.f32 %v2068, %v2067
  %v2070 = vmul.f32 0.5, %v2069
  %v2071 = vsub.f32 1.5, %v2070
  %v2072 = vmul.f32 %v2067, %v2071
  %vm2073 = vweird.f32 %v1589
  %vm2074 = vweird.f32 %v2067
  %vm2075 = vmor %vm2073, %vm2074
  %v2076 = vsel %vm2075, %v2067, %v2072
  %v2077 = vrsqrt.pop %v1590
  %v2078 = vmul.f32 %v2077, %v1590
  %v2079 = vmul.f32 %v2078, %v2077
  %v2080 = vmul.f32 0.5, %v2079
  %v2081 = vsub.f32 1.5, %v2080
  %v2082 = vmul.f32 %v2077, %v2081
  %vm2083 = vweird.f32 %v1590
  %vm2084 = vweird.f32 %v2077
  %vm2085 = vmor %vm2083, %vm2084
  %v2086 = vsel %vm2085, %v2077, %v2082
  %v2087 = vrsqrt.pop %v1591
  %v2088 = vmul.f32 %v2087, %v1591
  %v2089 = vmul.f32 %v2088, %v2087
  %v2090 = vmul.f32 0.5, %v2089
  %v2091 = vsub.f32 1.5, %v2090
  %v2092 = vmul.f32 %v2087, %v2091
  %vm2093 = vweird.f32 %v1591
  %vm2094 = vweird.f32 %v2087
  %vm2095 = vmor %vm2093, %vm2094
  %v2096 = vsel %vm2095, %v2087, %v2092
  %v2097 = vrsqrt.pop %v1592
  %v2098 = vmul.f32 %v2097, %v1592
  %v2099 = vmul.f32 %v2098, %v2097
  %v2100 = vmul.f32 0.5, %v2099
  %v2101 = vsub.f32 1.5, %v2100
  %v2102 = vmul.f32 %v2097, %v2101
  %vm2103 = vweird.f32 %v1592
  %vm2104 = vweird.f32 %v2097
  %vm2105 = vmor %vm2103, %vm2104
  %v2106 = vsel %vm2105, %v2097, %v2102
  %v2107 = vrsqrt.pop %v1593
  %v2108 = vmul.f32 %v2107, %v1593
  %v2109 = vmul.f32 %v2108, %v2107
  %v2110 = vmul.f32 0.5, %v2109
  %v2111 = vsub.f32 1.5, %v2110
  %v2112 = vmul.f32 %v2107, %v2111
  %vm2113 = vweird.f32 %v1593
  %vm2114 = vweird.f32 %v2107
  %vm2115 = vmor %vm2113, %vm2114
  %v2116 = vsel %vm2115, %v2107, %v2112
  %v2117 = vrsqrt.pop %v1594
  %v2118 = vmul.f32 %v2117, %v1594
  %v2119 = vmul.f32 %v2118, %v2117
  %v2120 = vmul.f32 0.5, %v2119
  %v2121 = vsub.f32 1.5, %v2120
  %v2122 = vmul.f32 %v2117, %v2121
  %vm2123 = vweird.f32 %v1594
  %vm2124 = vweird.f32 %v2117
  %vm2125 = vmor %vm2123, %vm2124
  %v2126 = vsel %vm2125, %v2117, %v2122
  %v2127 = vrsqrt.pop %v1595
  %v2128 = vmul.f32 %v2127, %v1595
  %v2129 = vmul.f32 %v2128, %v2127
  %v2130 = vmul.f32 0.5, %v2129
  %v2131 = vsub.f32 1.5, %v2130
  %v2132 = vmul.f32 %v2127, %v2131
  %vm2133 = vweird.f32 %v1595
  %vm2134 = vweird.f32 %v2127
  %vm2135 = vmor %vm2133, %vm2134
  %v2136 = vsel %vm2135, %v2127, %v2132
  %v2137 = vrsqrt.pop %v1596
  %v2138 = vmul.f32 %v2137, %v1596
  %v2139 = vmul.f32 %v2138, %v2137
  %v2140 = vmul.f32 0.5, %v2139
  %v2141 = vsub.f32 1.5, %v2140
  %v2142 = vmul.f32 %v2137, %v2141
  %vm2143 = vweird.f32 %v1596
  %vm2144 = vweird.f32 %v2137
  %vm2145 = vmor %vm2143, %vm2144
  %v2146 = vsel %vm2145, %v2137, %v2142
  %v2147 = vrsqrt.pop %v1597
  %v2148 = vmul.f32 %v2147, %v1597
  %v2149 = vmul.f32 %v2148, %v2147
  %v2150 = vmul.f32 0.5, %v2149
  %v2151 = vsub.f32 1.5, %v2150
  %v2152 = vmul.f32 %v2147, %v2151
  %vm2153 = vweird.f32 %v1597
  %vm2154 = vweird.f32 %v2147
  %vm2155 = vmor %vm2153, %vm2154
  %v2156 = vsel %vm2155, %v2147, %v2152
  %v2157 = vrsqrt.pop %v1598
  %v2158 = vmul.f32 %v2157, %v1598
  %v2159 = vmul.f32 %v2158, %v2157
  %v2160 = vmul.f32 0.5, %v2159
  %v2161 = vsub.f32 1.5, %v2160
  %v2162 = vmul.f32 %v2157, %v2161
  %vm2163 = vweird.f32 %v1598
  %vm2164 = vweird.f32 %v2157
  %vm2165 = vmor %vm2163, %vm2164
  %v2166 = vsel %vm2165, %v2157, %v2162
  %v2167 = vrsqrt.pop %v1599
  %v2168 = vmul.f32 %v2167, %v1599
  %v2169 = vmul.f32 %v2168, %v2167
  %v2170 = vmul.f32 0.5, %v2169
  %v2171 = vsub.f32 1.5, %v2170
  %v2172 = vmul.f32 %v2167, %v2171
  %vm2173 = vweird.f32 %v1599
  %vm2174 = vweird.f32 %v2167
  %vm2175 = vmor %vm2173, %vm2174
  %v2176 = vsel %vm2175, %v2167, %v2172
  %v2177 = vrsqrt.pop %v1600
  %v2178 = vmul.f32 %v2177, %v1600
  %v2179 = vmul.f32 %v2178, %v2177
  %v2180 = vmul.f32 0.5, %v2179
  %v2181 = vsub.f32 1.5, %v2180
  %v2182 = vmul.f32 %v2177, %v2181
  %vm2183 = vweird.f32 %v1600
  %vm2184 = vweird.f32 %v2177
  %vm2185 = vmor %vm2183, %vm2184
  %v2186 = vsel %vm2185, %v2177, %v2182
  %v2187 = vrsqrt.pop %v1601
  %v2188 = vmul.f32 %v2187, %v1601
  %v2189 = vmul.f32 %v2188, %v2187
  %v2190 = vmul.f32 0.5, %v2189
  %v2191 = vsub.f32 1.5, %v2190
  %v2192 = vmul.f32 %v2187, %v2191
  %vm2193 = vweird.f32 %v1601
  %vm2194 = vweird.f32 %v2187
  %vm2195 = vmor %vm2193, %vm2194
  %v2196 = vsel %vm2195, %v2187, %v2192
  %v2197 = vrsqrt.pop %v1602
  %v2198 = vmul.f32 %v2197, %v1602
  %v2199 = vmul.f32 %v2198, %v2197
  %v2200 = vmul.f32 0.5, %v2199
  %v2201 = vsub.f32 1.5, %v2200
  %v2202 = vmul.f32 %v2197, %v2201
  %vm2203 = vweird.f32 %v1602
  %vm2204 = vweird.f32 %v2197
  %vm2205 = vmor %vm2203, %vm2204
  %v2206 = vsel %vm2205, %v2197, %v2202
  %v2207 = vrsqrt.pop %v1603
  %v2208 = vmul.f32 %v2207, %v1603
  %v2209 = vmul.f32 %v2208, %v2207
  %v2210 = vmul.f32 0.5, %v2209
  %v2211 = vsub.f32 1.5, %v2210
  %v2212 = vmul.f32 %v2207, %v2211
  %vm2213 = vweird.f32 %v1603
  %vm2214 = vweird.f32 %v2207
  %vm2215 = vmor %vm2213, %vm2214
  %v2216 = vsel %vm2215, %v2207, %v2212
  %v2217 = vrsqrt.pop %v1604
  %v2218 = vmul.f32 %v2217, %v1604
  %v2219 = vmul.f32 %v2218, %v2217
  %v2220 = vmul.f32 0.5, %v2219
  %v2221 = vsub.f32 1.5, %v2220
  %v2222 = vmul.f32 %v2217, %v2221
  %vm2223 = vweird.f32 %v1604
  %vm2224 = vweird.f32 %v2217
  %vm2225 = vmor %vm2223, %vm2224
  %v2226 = vsel %vm2225, %v2217, %v2222
  %v2227 = vrsqrt.pop %v1605
  %v2228 = vmul.f32 %v2227, %v1605
  %v2229 = vmul.f32 %v2228, %v2227
  %v2230 = vmul.f32 0.5, %v2229
  %v2231 = vsub.f32 1.5, %v2230
  %v2232 = vmul.f32 %v2227, %v2231
  %vm2233 = vweird.f32 %v1605
  %vm2234 = vweird.f32 %v2227
  %vm2235 = vmor %vm2233, %vm2234
  %v2236 = vsel %vm2235, %v2227, %v2232
  %v2237 = vrsqrt.pop %v1606
  %v2238 = vmul.f32 %v2237, %v1606
  %v2239 = vmul.f32 %v2238, %v2237
  %v2240 = vmul.f32 0.5, %v2239
  %v2241 = vsub.f32 1.5, %v2240
  %v2242 = vmul.f32 %v2237, %v2241
  %vm2243 = vweird.f32 %v1606
  %vm2244 = vweird.f32 %v2237
  %vm2245 = vmor %vm2243, %vm2244
  %v2246 = vsel %vm2245, %v2237, %v2242
  %v2247 = vmul.f32 %v1159, %v1616
  %v2248 = vmul.f32 %v1160, %v1626
  %v2249 = vmul.f32 %v1161, %v1636
  %v2250 = vmul.f32 %v1162, %v1646
  %v2251 = vmul.f32 %v1163, %v1656
  %v2252 = vmul.f32 %v1164, %v1666
  %v2253 = vmul.f32 %v1165, %v1676
  %v2254 = vmul.f32 %v1166, %v1686
  %v2255 = vmul.f32 %v1167, %v1696
  %v2256 = vmul.f32 %v1168, %v1706
  %v2257 = vmul.f32 %v1169, %v1716
  %v2258 = vmul.f32 %v1170, %v1726
  %v2259 = vmul.f32 %v1171, %v1736
  %v2260 = vmul.f32 %v1172, %v1746
  %v2261 = vmul.f32 %v1173, %v1756
  %v2262 = vmul.f32 %v1174, %v1766
  %v2263 = vmul.f32 %v1175, %v1776
  %v2264 = vmul.f32 %v1176, %v1786
  %v2265 = vmul.f32 %v1177, %v1796
  %v2266 = vmul.f32 %v1178, %v1806
  %v2267 = vmul.f32 %v1179, %v1816
  %v2268 = vmul.f32 %v1180, %v1826
  %v2269 = vmul.f32 %v1181, %v1836
  %v2270 = vmul.f32 %v1182, %v1846
  %v2271 = vmul.f32 %v1183, %v1856
  %v2272 = vmul.f32 %v1184, %v1866
  %v2273 = vmul.f32 %v1185, %v1876
  %v2274 = vmul.f32 %v1186, %v1886
  %v2275 = vmul.f32 %v1187, %v1896
  %v2276 = vmul.f32 %v1188, %v1906
  %v2277 = vmul.f32 %v1189, %v1916
  %v2278 = vmul.f32 %v1190, %v1926
  %v2279 = vmul.f32 %v1191, %v1936
  %v2280 = vmul.f32 %v1192, %v1946
  %v2281 = vmul.f32 %v1193, %v1956
  %v2282 = vmul.f32 %v1194, %v1966
  %v2283 = vmul.f32 %v1195, %v1976
  %v2284 = vmul.f32 %v1196, %v1986
  %v2285 = vmul.f32 %v1197, %v1996
  %v2286 = vmul.f32 %v1198, %v2006
  %v2287 = vmul.f32 %v1199, %v2016
  %v2288 = vmul.f32 %v1200, %v2026
  %v2289 = vmul.f32 %v1201, %v2036
  %v2290 = vmul.f32 %v1202, %v2046
  %v2291 = vmul.f32 %v1203, %v2056
  %v2292 = vmul.f32 %v1204, %v2066
  %v2293 = vmul.f32 %v1205, %v2076
  %v2294 = vmul.f32 %v1206, %v2086
  %v2295 = vmul.f32 %v1207, %v2096
  %v2296 = vmul.f32 %v1208, %v2106
  %v2297 = vmul.f32 %v1209, %v2116
  %v2298 = vmul.f32 %v1210, %v2126
  %v2299 = vmul.f32 %v1211, %v2136
  %v2300 = vmul.f32 %v1212, %v2146
  %v2301 = vmul.f32 %v1213, %v2156
  %v2302 = vmul.f32 %v1214, %v2166
  %v2303 = vmul.f32 %v1215, %v2176
  %v2304 = vmul.f32 %v1216, %v2186
  %v2305 = vmul.f32 %v1217, %v2196
  %v2306 = vmul.f32 %v1218, %v2206
  %v2307 = vmul.f32 %v1219, %v2216
  %v2308 = vmul.f32 %v1220, %v2226
  %v2309 = vmul.f32 %v1221, %v2236
  %v2310 = vmul.f32 %v1222, %v2246
  %v2311 = vld [vmem:[%s3] sm:$0x1]
  %v2313 = vperm.slane %v2311, 0
  %v2315 = vmul.f32 %v2247, %v2313
  %v2316 = vmul.f32 %v2248, %v2313
  %v2317 = vmul.f32 %v2249, %v2313
  %v2318 = vmul.f32 %v2250, %v2313
  %v2319 = vmul.f32 %v2251, %v2313
  %v2320 = vmul.f32 %v2252, %v2313
  %v2321 = vmul.f32 %v2253, %v2313
  %v2322 = vmul.f32 %v2254, %v2313
  %v2323 = vmul.f32 %v2255, %v2313
  %v2324 = vmul.f32 %v2256, %v2313
  %v2325 = vmul.f32 %v2257, %v2313
  %v2326 = vmul.f32 %v2258, %v2313
  %v2327 = vmul.f32 %v2259, %v2313
  %v2328 = vmul.f32 %v2260, %v2313
  %v2329 = vmul.f32 %v2261, %v2313
  %v2330 = vmul.f32 %v2262, %v2313
  %v2331 = vmul.f32 %v2263, %v2313
  %v2332 = vmul.f32 %v2264, %v2313
  %v2333 = vmul.f32 %v2265, %v2313
  %v2334 = vmul.f32 %v2266, %v2313
  %v2335 = vmul.f32 %v2267, %v2313
  %v2336 = vmul.f32 %v2268, %v2313
  %v2337 = vmul.f32 %v2269, %v2313
  %v2338 = vmul.f32 %v2270, %v2313
  %v2339 = vmul.f32 %v2271, %v2313
  %v2340 = vmul.f32 %v2272, %v2313
  %v2341 = vmul.f32 %v2273, %v2313
  %v2342 = vmul.f32 %v2274, %v2313
  %v2343 = vmul.f32 %v2275, %v2313
  %v2344 = vmul.f32 %v2276, %v2313
  %v2345 = vmul.f32 %v2277, %v2313
  %v2346 = vmul.f32 %v2278, %v2313
  %v2347 = vmul.f32 %v2279, %v2313
  %v2348 = vmul.f32 %v2280, %v2313
  %v2349 = vmul.f32 %v2281, %v2313
  %v2350 = vmul.f32 %v2282, %v2313
  %v2351 = vmul.f32 %v2283, %v2313
  %v2352 = vmul.f32 %v2284, %v2313
  %v2353 = vmul.f32 %v2285, %v2313
  %v2354 = vmul.f32 %v2286, %v2313
  %v2355 = vmul.f32 %v2287, %v2313
  %v2356 = vmul.f32 %v2288, %v2313
  %v2357 = vmul.f32 %v2289, %v2313
  %v2358 = vmul.f32 %v2290, %v2313
  %v2359 = vmul.f32 %v2291, %v2313
  %v2360 = vmul.f32 %v2292, %v2313
  %v2361 = vmul.f32 %v2293, %v2313
  %v2362 = vmul.f32 %v2294, %v2313
  %v2363 = vmul.f32 %v2295, %v2313
  %v2364 = vmul.f32 %v2296, %v2313
  %v2365 = vmul.f32 %v2297, %v2313
  %v2366 = vmul.f32 %v2298, %v2313
  %v2367 = vmul.f32 %v2299, %v2313
  %v2368 = vmul.f32 %v2300, %v2313
  %v2369 = vmul.f32 %v2301, %v2313
  %v2370 = vmul.f32 %v2302, %v2313
  %v2371 = vmul.f32 %v2303, %v2313
  %v2372 = vmul.f32 %v2304, %v2313
  %v2373 = vmul.f32 %v2305, %v2313
  %v2374 = vmul.f32 %v2306, %v2313
  %v2375 = vmul.f32 %v2307, %v2313
  %v2376 = vmul.f32 %v2308, %v2313
  %v2377 = vmul.f32 %v2309, %v2313
  %v2378 = vmul.f32 %v2310, %v2313
  %v2379 = vld [vmem:[%s4] sm:$0x1]
  %v2381 = vperm.slane %v2379, 0
  %v2383 = vadd.f32 %v2315, %v2381
  %v2384 = vadd.f32 %v2316, %v2381
  %v2385 = vadd.f32 %v2317, %v2381
  %v2386 = vadd.f32 %v2318, %v2381
  %v2387 = vadd.f32 %v2319, %v2381
  %v2388 = vadd.f32 %v2320, %v2381
  %v2389 = vadd.f32 %v2321, %v2381
  %v2390 = vadd.f32 %v2322, %v2381
  %v2391 = vadd.f32 %v2323, %v2381
  %v2392 = vadd.f32 %v2324, %v2381
  %v2393 = vadd.f32 %v2325, %v2381
  %v2394 = vadd.f32 %v2326, %v2381
  %v2395 = vadd.f32 %v2327, %v2381
  %v2396 = vadd.f32 %v2328, %v2381
  %v2397 = vadd.f32 %v2329, %v2381
  %v2398 = vadd.f32 %v2330, %v2381
  %v2399 = vadd.f32 %v2331, %v2381
  %v2400 = vadd.f32 %v2332, %v2381
  %v2401 = vadd.f32 %v2333, %v2381
  %v2402 = vadd.f32 %v2334, %v2381
  %v2403 = vadd.f32 %v2335, %v2381
  %v2404 = vadd.f32 %v2336, %v2381
  %v2405 = vadd.f32 %v2337, %v2381
  %v2406 = vadd.f32 %v2338, %v2381
  %v2407 = vadd.f32 %v2339, %v2381
  %v2408 = vadd.f32 %v2340, %v2381
  %v2409 = vadd.f32 %v2341, %v2381
  %v2410 = vadd.f32 %v2342, %v2381
  %v2411 = vadd.f32 %v2343, %v2381
  %v2412 = vadd.f32 %v2344, %v2381
  %v2413 = vadd.f32 %v2345, %v2381
  %v2414 = vadd.f32 %v2346, %v2381
  %v2415 = vadd.f32 %v2347, %v2381
  %v2416 = vadd.f32 %v2348, %v2381
  %v2417 = vadd.f32 %v2349, %v2381
  %v2418 = vadd.f32 %v2350, %v2381
  %v2419 = vadd.f32 %v2351, %v2381
  %v2420 = vadd.f32 %v2352, %v2381
  %v2421 = vadd.f32 %v2353, %v2381
  %v2422 = vadd.f32 %v2354, %v2381
  %v2423 = vadd.f32 %v2355, %v2381
  %v2424 = vadd.f32 %v2356, %v2381
  %v2425 = vadd.f32 %v2357, %v2381
  %v2426 = vadd.f32 %v2358, %v2381
  %v2427 = vadd.f32 %v2359, %v2381
  %v2428 = vadd.f32 %v2360, %v2381
  %v2429 = vadd.f32 %v2361, %v2381
  %v2430 = vadd.f32 %v2362, %v2381
  %v2431 = vadd.f32 %v2363, %v2381
  %v2432 = vadd.f32 %v2364, %v2381
  %v2433 = vadd.f32 %v2365, %v2381
  %v2434 = vadd.f32 %v2366, %v2381
  %v2435 = vadd.f32 %v2367, %v2381
  %v2436 = vadd.f32 %v2368, %v2381
  %v2437 = vadd.f32 %v2369, %v2381
  %v2438 = vadd.f32 %v2370, %v2381
  %v2439 = vadd.f32 %v2371, %v2381
  %v2440 = vadd.f32 %v2372, %v2381
  %v2441 = vadd.f32 %v2373, %v2381
  %v2442 = vadd.f32 %v2374, %v2381
  %v2443 = vadd.f32 %v2375, %v2381
  %v2444 = vadd.f32 %v2376, %v2381
  %v2445 = vadd.f32 %v2377, %v2381
  %v2446 = vadd.f32 %v2378, %v2381
  %2447 = vst.msk [vmem:[%s5] sm:$0xff] %vm895, %v2383
  %2448 = vst.msk [vmem:[%s5 + $0x8] sm:$0xff] %vm895, %v2384
  %2449 = vst.msk [vmem:[%s5 + $0x10] sm:$0xff] %vm895, %v2385
  %2450 = vst.msk [vmem:[%s5 + $0x18] sm:$0xff] %vm895, %v2386
  %2451 = vst.msk [vmem:[%s5 + $0x20] sm:$0xff] %vm895, %v2387
  %2452 = vst.msk [vmem:[%s5 + $0x28] sm:$0xff] %vm895, %v2388
  %2453 = vst.msk [vmem:[%s5 + $0x30] sm:$0xff] %vm895, %v2389
  %2454 = vst.msk [vmem:[%s5 + $0x38] sm:$0xff] %vm895, %v2390
  %2455 = vst.msk [vmem:[%s5 + $0x40] sm:$0xff] %vm895, %v2391
  %2456 = vst.msk [vmem:[%s5 + $0x48] sm:$0xff] %vm895, %v2392
  %2457 = vst.msk [vmem:[%s5 + $0x50] sm:$0xff] %vm895, %v2393
  %2458 = vst.msk [vmem:[%s5 + $0x58] sm:$0xff] %vm895, %v2394
  %2459 = vst.msk [vmem:[%s5 + $0x60] sm:$0xff] %vm895, %v2395
  %2460 = vst.msk [vmem:[%s5 + $0x68] sm:$0xff] %vm895, %v2396
  %2461 = vst.msk [vmem:[%s5 + $0x70] sm:$0xff] %vm895, %v2397
  %2462 = vst.msk [vmem:[%s5 + $0x78] sm:$0xff] %vm895, %v2398
  %2463 = vst.msk [vmem:[%s5 + $0x80] sm:$0xff] %vm895, %v2399
  %2464 = vst.msk [vmem:[%s5 + $0x88] sm:$0xff] %vm895, %v2400
  %2465 = vst.msk [vmem:[%s5 + $0x90] sm:$0xff] %vm895, %v2401
  %2466 = vst.msk [vmem:[%s5 + $0x98] sm:$0xff] %vm895, %v2402
  %2467 = vst.msk [vmem:[%s5 + $0xa0] sm:$0xff] %vm895, %v2403
  %2468 = vst.msk [vmem:[%s5 + $0xa8] sm:$0xff] %vm895, %v2404
  %2469 = vst.msk [vmem:[%s5 + $0xb0] sm:$0xff] %vm895, %v2405
  %2470 = vst.msk [vmem:[%s5 + $0xb8] sm:$0xff] %vm895, %v2406
  %2471 = vst.msk [vmem:[%s5 + $0xc0] sm:$0xff] %vm895, %v2407
  %2472 = vst.msk [vmem:[%s5 + $0xc8] sm:$0xff] %vm895, %v2408
  %2473 = vst.msk [vmem:[%s5 + $0xd0] sm:$0xff] %vm895, %v2409
  %2474 = vst.msk [vmem:[%s5 + $0xd8] sm:$0xff] %vm895, %v2410
  %2475 = vst.msk [vmem:[%s5 + $0xe0] sm:$0xff] %vm895, %v2411
  %2476 = vst.msk [vmem:[%s5 + $0xe8] sm:$0xff] %vm895, %v2412
  %2477 = vst.msk [vmem:[%s5 + $0xf0] sm:$0xff] %vm895, %v2413
  %2478 = vst.msk [vmem:[%s5 + $0xf8] sm:$0xff] %vm895, %v2414
  %2479 = vst.msk [vmem:[%s5 + $0x100] sm:$0xff] %vm895, %v2415
  %2480 = vst.msk [vmem:[%s5 + $0x108] sm:$0xff] %vm895, %v2416
  %2481 = vst.msk [vmem:[%s5 + $0x110] sm:$0xff] %vm895, %v2417
  %2482 = vst.msk [vmem:[%s5 + $0x118] sm:$0xff] %vm895, %v2418
  %2483 = vst.msk [vmem:[%s5 + $0x120] sm:$0xff] %vm895, %v2419
  %2484 = vst.msk [vmem:[%s5 + $0x128] sm:$0xff] %vm895, %v2420
  %2485 = vst.msk [vmem:[%s5 + $0x130] sm:$0xff] %vm895, %v2421
  %2486 = vst.msk [vmem:[%s5 + $0x138] sm:$0xff] %vm895, %v2422
  %2487 = vst.msk [vmem:[%s5 + $0x140] sm:$0xff] %vm895, %v2423
  %2488 = vst.msk [vmem:[%s5 + $0x148] sm:$0xff] %vm895, %v2424
  %2489 = vst.msk [vmem:[%s5 + $0x150] sm:$0xff] %vm895, %v2425
  %2490 = vst.msk [vmem:[%s5 + $0x158] sm:$0xff] %vm895, %v2426
  %2491 = vst.msk [vmem:[%s5 + $0x160] sm:$0xff] %vm895, %v2427
  %2492 = vst.msk [vmem:[%s5 + $0x168] sm:$0xff] %vm895, %v2428
  %2493 = vst.msk [vmem:[%s5 + $0x170] sm:$0xff] %vm895, %v2429
  %2494 = vst.msk [vmem:[%s5 + $0x178] sm:$0xff] %vm895, %v2430
  %2495 = vst.msk [vmem:[%s5 + $0x180] sm:$0xff] %vm895, %v2431
  %2496 = vst.msk [vmem:[%s5 + $0x188] sm:$0xff] %vm895, %v2432
  %2497 = vst.msk [vmem:[%s5 + $0x190] sm:$0xff] %vm895, %v2433
  %2498 = vst.msk [vmem:[%s5 + $0x198] sm:$0xff] %vm895, %v2434
  %2499 = vst.msk [vmem:[%s5 + $0x1a0] sm:$0xff] %vm895, %v2435
  %2500 = vst.msk [vmem:[%s5 + $0x1a8] sm:$0xff] %vm895, %v2436
  %2501 = vst.msk [vmem:[%s5 + $0x1b0] sm:$0xff] %vm895, %v2437
  %2502 = vst.msk [vmem:[%s5 + $0x1b8] sm:$0xff] %vm895, %v2438
  %2503 = vst.msk [vmem:[%s5 + $0x1c0] sm:$0xff] %vm895, %v2439
  %2504 = vst.msk [vmem:[%s5 + $0x1c8] sm:$0xff] %vm895, %v2440
  %2505 = vst.msk [vmem:[%s5 + $0x1d0] sm:$0xff] %vm895, %v2441
  %2506 = vst.msk [vmem:[%s5 + $0x1d8] sm:$0xff] %vm895, %v2442
  %2507 = vst.msk [vmem:[%s5 + $0x1e0] sm:$0xff] %vm895, %v2443
  %2508 = vst.msk [vmem:[%s5 + $0x1e8] sm:$0xff] %vm895, %v2444
  %2509 = vst.msk [vmem:[%s5 + $0x1f0] sm:$0xff] %vm895, %v2445
  %2510 = vst.msk [vmem:[%s5 + $0x1f8] sm:$0xff] %vm895, %v2446
  // Predicated region
  $region22: #{fused_matmul.1} parent=0 // pred_check
    _
  $region23: #{fused_matmul.1} parent=0 // pred_check_branch
    %2512 = sbr.rel (0) target = $region25
  $region24: #{fused_matmul.1} parent=0 // pred_region
    _
  $region25: #{fused_matmul.1} parent=0 // pred_fallthru
    _
  // Predicated region
  $region26: #{fused_matmul.1} parent=0 // pred_check
    _
  $region27: #{fused_matmul.1} parent=0 // pred_check_branch
    %2514 = sbr.rel (0) target = $region29
  $region28: #{fused_matmul.1} parent=0 // pred_region
    _
  $region29: #{fused_matmul.1} parent=0 // pred_fallthru
    _

</llo_original>
